<compile_context>
chip_gen: v6e
topology: v6e:2x2x1
jax: 0.10.0
libtpu: 0.0.40
codegen_flags: <defaults>
</compile_context>

<pallas_src>
import functools

import jax
import jax.numpy as jnp
from jax.experimental import pallas as pl
from jax.experimental.pallas import tpu as pltpu  # noqa: F401  (kept for TPU params if needed)


# ------------------------- fused per-layer kernel -------------------------

def _gat_layer_kernel(x_ref, w_ref, vl_ref, vr_ref, adj_ref, bias_ref, o_ref,
                      *, num_heads, head_dim, activation):
    """Fused GATConv layer + activation.

    x_ref    : (N, F)      input node features
    w_ref    : (F, H*D)    projection weights (all heads)
    vl_ref   : (F, H)      W folded with attn_l  -> el = x @ vl  (source scores)
    vr_ref   : (F, H)      W folded with attn_r  -> er = x @ vr  (dest scores)
    adj_ref  : (N, N)      dense adjacency, adj[i, j] = 1 iff edge j -> i
    bias_ref : (1, H*D)    per-head bias, flattened
    o_ref    : (N, H*D)    flattened per-head output after activation
    """
    x = x_ref[...]                                                      # (N, F)

    # All-heads projection and folded attention scores: three MXU matmuls.
    feat = jnp.dot(x, w_ref[...], preferred_element_type=jnp.float32)  # (N, H*D)
    el = jnp.dot(x, vl_ref[...], preferred_element_type=jnp.float32)   # (N, H)
    er = jnp.dot(x, vr_ref[...], preferred_element_type=jnp.float32)   # (N, H)

    adj = adj_ref[...]
    mask = adj > 0.0

    outs = []
    for h in range(num_heads):                       # static unroll (H is tiny)
        # e[i, j] = leaky_relu(er[i, h] + el[j, h], slope 0.2)
        e = er[:, h:h + 1] + el[:, h:h + 1].T                          # (N, N)
        e = jnp.where(e > 0, e, 0.2 * e)
        e = jnp.where(mask, e, -1e30)                # f32-safe finite sentinel

        m = jnp.max(e, axis=1, keepdims=True)                          # (N, 1)
        p = jnp.where(mask, jnp.exp(e - m), 0.0)                       # (N, N)
        denom = jnp.sum(p, axis=1, keepdims=True)
        denom = jnp.where(denom == 0.0, 1.0, denom)
        alpha = p * pl.reciprocal(denom, approx=True)                  # edge softmax

        feat_h = feat[:, h * head_dim:(h + 1) * head_dim]              # (N, D)
        outs.append(jnp.dot(alpha, feat_h,
                            preferred_element_type=jnp.float32))       # (N, D)

    out = jnp.concatenate(outs, axis=1) + bias_ref[...]                # (N, H*D)

    if activation == "elu":
        out = jnp.where(out > 0, out, jnp.exp(out) - 1.0)
    elif activation == "log_softmax":
        mx = jnp.max(out, axis=1, keepdims=True)
        s = out - mx
        lse = jnp.log(jnp.sum(jnp.exp(s), axis=1, keepdims=True))
        out = s - lse

    o_ref[...] = out                                 # single lane-dense store


# ------------------------- wrappers -------------------------

def gat_layer(x, adj, w, attn_l, attn_r, bias, *, activation):
    """One fused GATConv layer (eval mode) + trailing activation.

    Returns flattened (N, H*D) output.
    """
    N, F = x.shape
    H, D = attn_l.shape

    # Fold the per-head attention vectors into the projection (tiny one-off
    # contraction done on parameters outside the kernel):
    #   vl[f, h] = sum_d W[f, h, d] * attn_l[h, d]   (likewise vr).
    w3 = w.reshape(F, H, D)
    vl = jnp.einsum("fhd,hd->fh", w3, attn_l)
    vr = jnp.einsum("fhd,hd->fh", w3, attn_r)
    bias_flat = bias.reshape(1, H * D)

    kernel = functools.partial(_gat_layer_kernel,
                               num_heads=H, head_dim=D, activation=activation)

    # Single invocation (no grid): at these sizes the whole working set fits
    # in VMEM, so BlockSpec tiling / head grids would be pure launch overhead.
    # TODO(synk): if N grows large, tile adj over destination rows
    # (block (TI, N)) and stream it with a grid instead of whole-array blocks.
    return pl.pallas_call(
        kernel,
        out_shape=jax.ShapeDtypeStruct((N, H * D), jnp.float32),
    )(x, w, vl, vr, adj, bias_flat)


def gat_net_forward(feat, adj, params):
    """Forward pass of GAT_Net (eval: all dropouts are identity)."""
    # layer 1: GATConv + flatten heads + ELU (fused into one kernel)
    h = gat_layer(feat, adj,
                  params["w1"], params["al1"], params["ar1"], params["b1"],
                  activation="elu")
    # layer 2: GATConv + flatten heads + log_softmax (fused into one kernel)
    out = gat_layer(h, adj,
                    params["w2"], params["al2"], params["ar2"], params["b2"],
                    activation="log_softmax")
    return out


# ------------------------- main -------------------------

if __name__ == "__main__":
    # Small synthetic configuration (implied by GAT_Net.__init__):
    N = 16                 # number of graph nodes
    num_features = 8       # graph.ndata['feat'].shape[1]
    hidden = 8             # args.hidden
    heads = 4              # args.heads
    num_classes = 4        # len(g.ndata['label'].unique())
    output_heads = 1       # args.output_heads

    key = jax.random.PRNGKey(0)
    (k_feat, k_adj, k_w1, k_al1, k_ar1,
     k_w2, k_al2, k_ar2) = jax.random.split(key, 8)

    # Node features and dense adjacency (with self loops).
    feat = jax.random.normal(k_feat, (N, num_features), dtype=jnp.float32)
    adj = (jax.random.uniform(k_adj, (N, N)) < 0.3).astype(jnp.float32)
    adj = jnp.maximum(adj, jnp.eye(N, dtype=jnp.float32))

    # Deterministic parameters (synthetic init, no checkpoint).
    params = {
        "w1": 0.1 * jax.random.normal(k_w1, (num_features, heads * hidden),
                                      dtype=jnp.float32),
        "al1": 0.1 * jax.random.normal(k_al1, (heads, hidden),
                                       dtype=jnp.float32),
        "ar1": 0.1 * jax.random.normal(k_ar1, (heads, hidden),
                                       dtype=jnp.float32),
        "b1": jnp.zeros((heads, hidden), dtype=jnp.float32),
        "w2": 0.1 * jax.random.normal(k_w2,
                                      (heads * hidden,
                                       output_heads * num_classes),
                                      dtype=jnp.float32),
        "al2": 0.1 * jax.random.normal(k_al2, (output_heads, num_classes),
                                       dtype=jnp.float32),
        "ar2": 0.1 * jax.random.normal(k_ar2, (output_heads, num_classes),
                                       dtype=jnp.float32),
        "b2": jnp.zeros((output_heads, num_classes), dtype=jnp.float32),
    }

    # TODO(synk): dropout (training-mode) not implemented; forward runs in eval
    # mode where F.dropout / attn_drop are identities.

    out = jax.jit(gat_net_forward)(feat, adj, params)
    out = jax.block_until_ready(out)

    assert out.shape == (N, output_heads * num_classes)
    assert bool(jnp.all(jnp.isfinite(out)))
    print("KERNEL_OK")
</pallas_src>

<mosaic_0001>
module attributes {stable_mosaic.version = 11 : i64} {
  func.func @_gat_layer_kernel(%arg0: memref<16x8xf32, #tpu.memory_space<vmem>>, %arg1: memref<8x32xf32, #tpu.memory_space<vmem>>, %arg2: memref<8x4xf32, #tpu.memory_space<vmem>>, %arg3: memref<8x4xf32, #tpu.memory_space<vmem>>, %arg4: memref<16x16xf32, #tpu.memory_space<vmem>>, %arg5: memref<1x32xf32, #tpu.memory_space<vmem>>, %arg6: memref<16x32xf32, #tpu.memory_space<vmem>>) attributes {dimension_semantics = [], scalar_prefetch = 0 : i64, scratch_operands = 0 : i64, tpu.core_type = #tpu.core_type<tc>} {
    %c0 = arith.constant 0 : index
    %c0_0 = arith.constant 0 : index
    %0 = vector.load %arg0[%c0, %c0_0] : memref<16x8xf32, #tpu.memory_space<vmem>>, vector<16x8xf32>
    %c0_1 = arith.constant 0 : index
    %c0_2 = arith.constant 0 : index
    %1 = vector.load %arg1[%c0_1, %c0_2] : memref<8x32xf32, #tpu.memory_space<vmem>>, vector<8x32xf32>
    %cst = arith.constant dense<0.000000e+00> : vector<16x32xf32>
    %2 = tpu.matmul %0, %1, %cst {dimension_numbers = #tpu.dot_dimension_numbers<[1], [0], [0], [1], [0, 0, 1, 1], [], []>} : vector<16x8xf32>, vector<8x32xf32>, vector<16x32xf32> -> vector<16x32xf32>
    %c0_3 = arith.constant 0 : index
    %c0_4 = arith.constant 0 : index
    %3 = vector.load %arg2[%c0_3, %c0_4] : memref<8x4xf32, #tpu.memory_space<vmem>>, vector<8x4xf32>
    %cst_5 = arith.constant dense<0.000000e+00> : vector<16x4xf32>
    %4 = tpu.matmul %0, %3, %cst_5 {dimension_numbers = #tpu.dot_dimension_numbers<[1], [0], [0], [1], [0, 0, 1, 1], [], []>} : vector<16x8xf32>, vector<8x4xf32>, vector<16x4xf32> -> vector<16x4xf32>
    %c0_6 = arith.constant 0 : index
    %c0_7 = arith.constant 0 : index
    %5 = vector.load %arg3[%c0_6, %c0_7] : memref<8x4xf32, #tpu.memory_space<vmem>>, vector<8x4xf32>
    %cst_8 = arith.constant dense<0.000000e+00> : vector<16x4xf32>
    %6 = tpu.matmul %0, %5, %cst_8 {dimension_numbers = #tpu.dot_dimension_numbers<[1], [0], [0], [1], [0, 0, 1, 1], [], []>} : vector<16x8xf32>, vector<8x4xf32>, vector<16x4xf32> -> vector<16x4xf32>
    %c0_9 = arith.constant 0 : index
    %c0_10 = arith.constant 0 : index
    %7 = vector.load %arg4[%c0_9, %c0_10] : memref<16x16xf32, #tpu.memory_space<vmem>>, vector<16x16xf32>
    %cst_11 = arith.constant 0.000000e+00 : f32
    %8 = vector.broadcast %cst_11 : f32 to vector<16x16xf32>
    %9 = arith.cmpf ogt, %7, %8 : vector<16x16xf32>
    %10 = vector.extract_strided_slice %6 {offsets = [0, 0], sizes = [16, 1], strides = [1, 1]} : vector<16x4xf32> to vector<16x1xf32>
    %11 = vector.extract_strided_slice %4 {offsets = [0, 0], sizes = [16, 1], strides = [1, 1]} : vector<16x4xf32> to vector<16x1xf32>
    %12 = tpu.transpose %11, [1, 0] : vector<16x1xf32> -> vector<1x16xf32>
    %13 = vector.broadcast %10 : vector<16x1xf32> to vector<16x16xf32>
    %14 = vector.broadcast %12 : vector<1x16xf32> to vector<16x16xf32>
    %15 = arith.addf %13, %14 : vector<16x16xf32>
    %cst_12 = arith.constant 0.000000e+00 : f32
    %16 = vector.broadcast %cst_12 : f32 to vector<16x16xf32>
    %17 = arith.cmpf ogt, %15, %16 : vector<16x16xf32>
    %cst_13 = arith.constant 2.000000e-01 : f32
    %18 = vector.broadcast %cst_13 : f32 to vector<16x16xf32>
    %19 = arith.mulf %18, %15 : vector<16x16xf32>
    %20 = arith.select %17, %15, %19 : vector<16x16xi1>, vector<16x16xf32>
    %cst_14 = arith.constant -1.000000e+30 : f32
    %21 = vector.broadcast %cst_14 : f32 to vector<16x16xf32>
    %22 = arith.select %9, %20, %21 : vector<16x16xi1>, vector<16x16xf32>
    %cst_15 = arith.constant dense<0xFF800000> : vector<16xf32>
    %23 = vector.multi_reduction <maximumf>, %22, %cst_15 [1] : vector<16x16xf32> to vector<16xf32>
    %24 = vector.shape_cast %23 : vector<16xf32> to vector<16x1xf32>
    %25 = vector.broadcast %24 : vector<16x1xf32> to vector<16x16xf32>
    %26 = arith.subf %22, %25 : vector<16x16xf32>
    %27 = math.exp %26 : vector<16x16xf32>
    %cst_16 = arith.constant 0.000000e+00 : f32
    %28 = vector.broadcast %cst_16 : f32 to vector<16x16xf32>
    %29 = arith.select %9, %27, %28 : vector<16x16xi1>, vector<16x16xf32>
    %cst_17 = arith.constant dense<0.000000e+00> : vector<16xf32>
    %30 = vector.multi_reduction <add>, %29, %cst_17 [1] : vector<16x16xf32> to vector<16xf32>
    %31 = vector.shape_cast %30 : vector<16xf32> to vector<16x1xf32>
    %cst_18 = arith.constant 0.000000e+00 : f32
    %32 = vector.broadcast %cst_18 : f32 to vector<16x1xf32>
    %33 = arith.cmpf oeq, %31, %32 : vector<16x1xf32>
    %cst_19 = arith.constant 1.000000e+00 : f32
    %34 = vector.broadcast %cst_19 : f32 to vector<16x1xf32>
    %35 = arith.select %33, %34, %31 : vector<16x1xi1>, vector<16x1xf32>
    %36 = tpu.reciprocal %35 {approx = true} : vector<16x1xf32> -> vector<16x1xf32>
    %37 = vector.broadcast %36 : vector<16x1xf32> to vector<16x16xf32>
    %38 = arith.mulf %29, %37 : vector<16x16xf32>
    %39 = vector.extract_strided_slice %2 {offsets = [0, 0], sizes = [16, 8], strides = [1, 1]} : vector<16x32xf32> to vector<16x8xf32>
    %cst_20 = arith.constant dense<0.000000e+00> : vector<16x8xf32>
    %40 = tpu.matmul %38, %39, %cst_20 {dimension_numbers = #tpu.dot_dimension_numbers<[1], [0], [0], [1], [0, 0, 1, 1], [], []>} : vector<16x16xf32>, vector<16x8xf32>, vector<16x8xf32> -> vector<16x8xf32>
    %41 = vector.extract_strided_slice %6 {offsets = [0, 1], sizes = [16, 1], strides = [1, 1]} : vector<16x4xf32> to vector<16x1xf32>
    %42 = vector.extract_strided_slice %4 {offsets = [0, 1], sizes = [16, 1], strides = [1, 1]} : vector<16x4xf32> to vector<16x1xf32>
    %43 = tpu.transpose %42, [1, 0] : vector<16x1xf32> -> vector<1x16xf32>
    %44 = vector.broadcast %41 : vector<16x1xf32> to vector<16x16xf32>
    %45 = vector.broadcast %43 : vector<1x16xf32> to vector<16x16xf32>
    %46 = arith.addf %44, %45 : vector<16x16xf32>
    %cst_21 = arith.constant 0.000000e+00 : f32
    %47 = vector.broadcast %cst_21 : f32 to vector<16x16xf32>
    %48 = arith.cmpf ogt, %46, %47 : vector<16x16xf32>
    %cst_22 = arith.constant 2.000000e-01 : f32
    %49 = vector.broadcast %cst_22 : f32 to vector<16x16xf32>
    %50 = arith.mulf %49, %46 : vector<16x16xf32>
    %51 = arith.select %48, %46, %50 : vector<16x16xi1>, vector<16x16xf32>
    %cst_23 = arith.constant -1.000000e+30 : f32
    %52 = vector.broadcast %cst_23 : f32 to vector<16x16xf32>
    %53 = arith.select %9, %51, %52 : vector<16x16xi1>, vector<16x16xf32>
    %cst_24 = arith.constant dense<0xFF800000> : vector<16xf32>
    %54 = vector.multi_reduction <maximumf>, %53, %cst_24 [1] : vector<16x16xf32> to vector<16xf32>
    %55 = vector.shape_cast %54 : vector<16xf32> to vector<16x1xf32>
    %56 = vector.broadcast %55 : vector<16x1xf32> to vector<16x16xf32>
    %57 = arith.subf %53, %56 : vector<16x16xf32>
    %58 = math.exp %57 : vector<16x16xf32>
    %cst_25 = arith.constant 0.000000e+00 : f32
    %59 = vector.broadcast %cst_25 : f32 to vector<16x16xf32>
    %60 = arith.select %9, %58, %59 : vector<16x16xi1>, vector<16x16xf32>
    %cst_26 = arith.constant dense<0.000000e+00> : vector<16xf32>
    %61 = vector.multi_reduction <add>, %60, %cst_26 [1] : vector<16x16xf32> to vector<16xf32>
    %62 = vector.shape_cast %61 : vector<16xf32> to vector<16x1xf32>
    %cst_27 = arith.constant 0.000000e+00 : f32
    %63 = vector.broadcast %cst_27 : f32 to vector<16x1xf32>
    %64 = arith.cmpf oeq, %62, %63 : vector<16x1xf32>
    %cst_28 = arith.constant 1.000000e+00 : f32
    %65 = vector.broadcast %cst_28 : f32 to vector<16x1xf32>
    %66 = arith.select %64, %65, %62 : vector<16x1xi1>, vector<16x1xf32>
    %67 = tpu.reciprocal %66 {approx = true} : vector<16x1xf32> -> vector<16x1xf32>
    %68 = vector.broadcast %67 : vector<16x1xf32> to vector<16x16xf32>
    %69 = arith.mulf %60, %68 : vector<16x16xf32>
    %70 = vector.extract_strided_slice %2 {offsets = [0, 8], sizes = [16, 8], strides = [1, 1]} : vector<16x32xf32> to vector<16x8xf32>
    %cst_29 = arith.constant dense<0.000000e+00> : vector<16x8xf32>
    %71 = tpu.matmul %69, %70, %cst_29 {dimension_numbers = #tpu.dot_dimension_numbers<[1], [0], [0], [1], [0, 0, 1, 1], [], []>} : vector<16x16xf32>, vector<16x8xf32>, vector<16x8xf32> -> vector<16x8xf32>
    %72 = vector.extract_strided_slice %6 {offsets = [0, 2], sizes = [16, 1], strides = [1, 1]} : vector<16x4xf32> to vector<16x1xf32>
    %73 = vector.extract_strided_slice %4 {offsets = [0, 2], sizes = [16, 1], strides = [1, 1]} : vector<16x4xf32> to vector<16x1xf32>
    %74 = tpu.transpose %73, [1, 0] : vector<16x1xf32> -> vector<1x16xf32>
    %75 = vector.broadcast %72 : vector<16x1xf32> to vector<16x16xf32>
    %76 = vector.broadcast %74 : vector<1x16xf32> to vector<16x16xf32>
    %77 = arith.addf %75, %76 : vector<16x16xf32>
    %cst_30 = arith.constant 0.000000e+00 : f32
    %78 = vector.broadcast %cst_30 : f32 to vector<16x16xf32>
    %79 = arith.cmpf ogt, %77, %78 : vector<16x16xf32>
    %cst_31 = arith.constant 2.000000e-01 : f32
    %80 = vector.broadcast %cst_31 : f32 to vector<16x16xf32>
    %81 = arith.mulf %80, %77 : vector<16x16xf32>
    %82 = arith.select %79, %77, %81 : vector<16x16xi1>, vector<16x16xf32>
    %cst_32 = arith.constant -1.000000e+30 : f32
    %83 = vector.broadcast %cst_32 : f32 to vector<16x16xf32>
    %84 = arith.select %9, %82, %83 : vector<16x16xi1>, vector<16x16xf32>
    %cst_33 = arith.constant dense<0xFF800000> : vector<16xf32>
    %85 = vector.multi_reduction <maximumf>, %84, %cst_33 [1] : vector<16x16xf32> to vector<16xf32>
    %86 = vector.shape_cast %85 : vector<16xf32> to vector<16x1xf32>
    %87 = vector.broadcast %86 : vector<16x1xf32> to vector<16x16xf32>
    %88 = arith.subf %84, %87 : vector<16x16xf32>
    %89 = math.exp %88 : vector<16x16xf32>
    %cst_34 = arith.constant 0.000000e+00 : f32
    %90 = vector.broadcast %cst_34 : f32 to vector<16x16xf32>
    %91 = arith.select %9, %89, %90 : vector<16x16xi1>, vector<16x16xf32>
    %cst_35 = arith.constant dense<0.000000e+00> : vector<16xf32>
    %92 = vector.multi_reduction <add>, %91, %cst_35 [1] : vector<16x16xf32> to vector<16xf32>
    %93 = vector.shape_cast %92 : vector<16xf32> to vector<16x1xf32>
    %cst_36 = arith.constant 0.000000e+00 : f32
    %94 = vector.broadcast %cst_36 : f32 to vector<16x1xf32>
    %95 = arith.cmpf oeq, %93, %94 : vector<16x1xf32>
    %cst_37 = arith.constant 1.000000e+00 : f32
    %96 = vector.broadcast %cst_37 : f32 to vector<16x1xf32>
    %97 = arith.select %95, %96, %93 : vector<16x1xi1>, vector<16x1xf32>
    %98 = tpu.reciprocal %97 {approx = true} : vector<16x1xf32> -> vector<16x1xf32>
    %99 = vector.broadcast %98 : vector<16x1xf32> to vector<16x16xf32>
    %100 = arith.mulf %91, %99 : vector<16x16xf32>
    %101 = vector.extract_strided_slice %2 {offsets = [0, 16], sizes = [16, 8], strides = [1, 1]} : vector<16x32xf32> to vector<16x8xf32>
    %cst_38 = arith.constant dense<0.000000e+00> : vector<16x8xf32>
    %102 = tpu.matmul %100, %101, %cst_38 {dimension_numbers = #tpu.dot_dimension_numbers<[1], [0], [0], [1], [0, 0, 1, 1], [], []>} : vector<16x16xf32>, vector<16x8xf32>, vector<16x8xf32> -> vector<16x8xf32>
    %103 = vector.extract_strided_slice %6 {offsets = [0, 3], sizes = [16, 1], strides = [1, 1]} : vector<16x4xf32> to vector<16x1xf32>
    %104 = vector.extract_strided_slice %4 {offsets = [0, 3], sizes = [16, 1], strides = [1, 1]} : vector<16x4xf32> to vector<16x1xf32>
    %105 = tpu.transpose %104, [1, 0] : vector<16x1xf32> -> vector<1x16xf32>
    %106 = vector.broadcast %103 : vector<16x1xf32> to vector<16x16xf32>
    %107 = vector.broadcast %105 : vector<1x16xf32> to vector<16x16xf32>
    %108 = arith.addf %106, %107 : vector<16x16xf32>
    %cst_39 = arith.constant 0.000000e+00 : f32
    %109 = vector.broadcast %cst_39 : f32 to vector<16x16xf32>
    %110 = arith.cmpf ogt, %108, %109 : vector<16x16xf32>
    %cst_40 = arith.constant 2.000000e-01 : f32
    %111 = vector.broadcast %cst_40 : f32 to vector<16x16xf32>
    %112 = arith.mulf %111, %108 : vector<16x16xf32>
    %113 = arith.select %110, %108, %112 : vector<16x16xi1>, vector<16x16xf32>
    %cst_41 = arith.constant -1.000000e+30 : f32
    %114 = vector.broadcast %cst_41 : f32 to vector<16x16xf32>
    %115 = arith.select %9, %113, %114 : vector<16x16xi1>, vector<16x16xf32>
    %cst_42 = arith.constant dense<0xFF800000> : vector<16xf32>
    %116 = vector.multi_reduction <maximumf>, %115, %cst_42 [1] : vector<16x16xf32> to vector<16xf32>
    %117 = vector.shape_cast %116 : vector<16xf32> to vector<16x1xf32>
    %118 = vector.broadcast %117 : vector<16x1xf32> to vector<16x16xf32>
    %119 = arith.subf %115, %118 : vector<16x16xf32>
    %120 = math.exp %119 : vector<16x16xf32>
    %cst_43 = arith.constant 0.000000e+00 : f32
    %121 = vector.broadcast %cst_43 : f32 to vector<16x16xf32>
    %122 = arith.select %9, %120, %121 : vector<16x16xi1>, vector<16x16xf32>
    %cst_44 = arith.constant dense<0.000000e+00> : vector<16xf32>
    %123 = vector.multi_reduction <add>, %122, %cst_44 [1] : vector<16x16xf32> to vector<16xf32>
    %124 = vector.shape_cast %123 : vector<16xf32> to vector<16x1xf32>
    %cst_45 = arith.constant 0.000000e+00 : f32
    %125 = vector.broadcast %cst_45 : f32 to vector<16x1xf32>
    %126 = arith.cmpf oeq, %124, %125 : vector<16x1xf32>
    %cst_46 = arith.constant 1.000000e+00 : f32
    %127 = vector.broadcast %cst_46 : f32 to vector<16x1xf32>
    %128 = arith.select %126, %127, %124 : vector<16x1xi1>, vector<16x1xf32>
    %129 = tpu.reciprocal %128 {approx = true} : vector<16x1xf32> -> vector<16x1xf32>
    %130 = vector.broadcast %129 : vector<16x1xf32> to vector<16x16xf32>
    %131 = arith.mulf %122, %130 : vector<16x16xf32>
    %132 = vector.extract_strided_slice %2 {offsets = [0, 24], sizes = [16, 8], strides = [1, 1]} : vector<16x32xf32> to vector<16x8xf32>
    %cst_47 = arith.constant dense<0.000000e+00> : vector<16x8xf32>
    %133 = tpu.matmul %131, %132, %cst_47 {dimension_numbers = #tpu.dot_dimension_numbers<[1], [0], [0], [1], [0, 0, 1, 1], [], []>} : vector<16x16xf32>, vector<16x8xf32>, vector<16x8xf32> -> vector<16x8xf32>
    %134 = tpu.concatenate %40, %71, %102, %133 in 1 : vector<16x8xf32>, vector<16x8xf32>, vector<16x8xf32>, vector<16x8xf32> -> vector<16x32xf32>
    %c0_48 = arith.constant 0 : index
    %c0_49 = arith.constant 0 : index
    %135 = vector.load %arg5[%c0_48, %c0_49] : memref<1x32xf32, #tpu.memory_space<vmem>>, vector<1x32xf32>
    %136 = vector.broadcast %135 : vector<1x32xf32> to vector<16x32xf32>
    %137 = arith.addf %134, %136 : vector<16x32xf32>
    %cst_50 = arith.constant 0.000000e+00 : f32
    %138 = vector.broadcast %cst_50 : f32 to vector<16x32xf32>
    %139 = arith.cmpf ogt, %137, %138 : vector<16x32xf32>
    %140 = math.exp %137 : vector<16x32xf32>
    %cst_51 = arith.constant 1.000000e+00 : f32
    %141 = vector.broadcast %cst_51 : f32 to vector<16x32xf32>
    %142 = arith.subf %140, %141 : vector<16x32xf32>
    %143 = arith.select %139, %137, %142 : vector<16x32xi1>, vector<16x32xf32>
    %c0_52 = arith.constant 0 : index
    %c0_53 = arith.constant 0 : index
    %144 = vector.load %arg6[%c0_52, %c0_53] : memref<16x32xf32, #tpu.memory_space<vmem>>, vector<16x32xf32>
    tpu.vector_store %arg6[%c0_52, %c0_53], %143 {strides = array<i32>} : memref<16x32xf32, #tpu.memory_space<vmem>>, vector<16x32xf32>,
    return
  }
}

module attributes {stable_mosaic.version = 11 : i64} {
  func.func @_gat_layer_kernel(%arg0: memref<16x32xf32, #tpu.memory_space<vmem>>, %arg1: memref<32x4xf32, #tpu.memory_space<vmem>>, %arg2: memref<32x1xf32, #tpu.memory_space<vmem>>, %arg3: memref<32x1xf32, #tpu.memory_space<vmem>>, %arg4: memref<16x16xf32, #tpu.memory_space<vmem>>, %arg5: memref<1x4xf32, #tpu.memory_space<vmem>>, %arg6: memref<16x4xf32, #tpu.memory_space<vmem>>) attributes {dimension_semantics = [], scalar_prefetch = 0 : i64, scratch_operands = 0 : i64, tpu.core_type = #tpu.core_type<tc>} {
    %c0 = arith.constant 0 : index
    %c0_0 = arith.constant 0 : index
    %0 = vector.load %arg0[%c0, %c0_0] : memref<16x32xf32, #tpu.memory_space<vmem>>, vector<16x32xf32>
    %c0_1 = arith.constant 0 : index
    %c0_2 = arith.constant 0 : index
    %1 = vector.load %arg1[%c0_1, %c0_2] : memref<32x4xf32, #tpu.memory_space<vmem>>, vector<32x4xf32>
    %cst = arith.constant dense<0.000000e+00> : vector<16x4xf32>
    %2 = tpu.matmul %0, %1, %cst {dimension_numbers = #tpu.dot_dimension_numbers<[1], [0], [0], [1], [0, 0, 1, 1], [], []>} : vector<16x32xf32>, vector<32x4xf32>, vector<16x4xf32> -> vector<16x4xf32>
    %c0_3 = arith.constant 0 : index
    %c0_4 = arith.constant 0 : index
    %3 = vector.load %arg2[%c0_3, %c0_4] : memref<32x1xf32, #tpu.memory_space<vmem>>, vector<32x1xf32>
    %cst_5 = arith.constant dense<0.000000e+00> : vector<16x1xf32>
    %4 = tpu.matmul %0, %3, %cst_5 {dimension_numbers = #tpu.dot_dimension_numbers<[1], [0], [0], [1], [0, 0, 1, 1], [], []>} : vector<16x32xf32>, vector<32x1xf32>, vector<16x1xf32> -> vector<16x1xf32>
    %c0_6 = arith.constant 0 : index
    %c0_7 = arith.constant 0 : index
    %5 = vector.load %arg3[%c0_6, %c0_7] : memref<32x1xf32, #tpu.memory_space<vmem>>, vector<32x1xf32>
    %cst_8 = arith.constant dense<0.000000e+00> : vector<16x1xf32>
    %6 = tpu.matmul %0, %5, %cst_8 {dimension_numbers = #tpu.dot_dimension_numbers<[1], [0], [0], [1], [0, 0, 1, 1], [], []>} : vector<16x32xf32>, vector<32x1xf32>, vector<16x1xf32> -> vector<16x1xf32>
    %c0_9 = arith.constant 0 : index
    %c0_10 = arith.constant 0 : index
    %7 = vector.load %arg4[%c0_9, %c0_10] : memref<16x16xf32, #tpu.memory_space<vmem>>, vector<16x16xf32>
    %cst_11 = arith.constant 0.000000e+00 : f32
    %8 = vector.broadcast %cst_11 : f32 to vector<16x16xf32>
    %9 = arith.cmpf ogt, %7, %8 : vector<16x16xf32>
    %10 = tpu.transpose %4, [1, 0] : vector<16x1xf32> -> vector<1x16xf32>
    %11 = vector.broadcast %6 : vector<16x1xf32> to vector<16x16xf32>
    %12 = vector.broadcast %10 : vector<1x16xf32> to vector<16x16xf32>
    %13 = arith.addf %11, %12 : vector<16x16xf32>
    %cst_12 = arith.constant 0.000000e+00 : f32
    %14 = vector.broadcast %cst_12 : f32 to vector<16x16xf32>
    %15 = arith.cmpf ogt, %13, %14 : vector<16x16xf32>
    %cst_13 = arith.constant 2.000000e-01 : f32
    %16 = vector.broadcast %cst_13 : f32 to vector<16x16xf32>
    %17 = arith.mulf %16, %13 : vector<16x16xf32>
    %18 = arith.select %15, %13, %17 : vector<16x16xi1>, vector<16x16xf32>
    %cst_14 = arith.constant -1.000000e+30 : f32
    %19 = vector.broadcast %cst_14 : f32 to vector<16x16xf32>
    %20 = arith.select %9, %18, %19 : vector<16x16xi1>, vector<16x16xf32>
    %cst_15 = arith.constant dense<0xFF800000> : vector<16xf32>
    %21 = vector.multi_reduction <maximumf>, %20, %cst_15 [1] : vector<16x16xf32> to vector<16xf32>
    %22 = vector.shape_cast %21 : vector<16xf32> to vector<16x1xf32>
    %23 = vector.broadcast %22 : vector<16x1xf32> to vector<16x16xf32>
    %24 = arith.subf %20, %23 : vector<16x16xf32>
    %25 = math.exp %24 : vector<16x16xf32>
    %cst_16 = arith.constant 0.000000e+00 : f32
    %26 = vector.broadcast %cst_16 : f32 to vector<16x16xf32>
    %27 = arith.select %9, %25, %26 : vector<16x16xi1>, vector<16x16xf32>
    %cst_17 = arith.constant dense<0.000000e+00> : vector<16xf32>
    %28 = vector.multi_reduction <add>, %27, %cst_17 [1] : vector<16x16xf32> to vector<16xf32>
    %29 = vector.shape_cast %28 : vector<16xf32> to vector<16x1xf32>
    %cst_18 = arith.constant 0.000000e+00 : f32
    %30 = vector.broadcast %cst_18 : f32 to vector<16x1xf32>
    %31 = arith.cmpf oeq, %29, %30 : vector<16x1xf32>
    %cst_19 = arith.constant 1.000000e+00 : f32
    %32 = vector.broadcast %cst_19 : f32 to vector<16x1xf32>
    %33 = arith.select %31, %32, %29 : vector<16x1xi1>, vector<16x1xf32>
    %34 = tpu.reciprocal %33 {approx = true} : vector<16x1xf32> -> vector<16x1xf32>
    %35 = vector.broadcast %34 : vector<16x1xf32> to vector<16x16xf32>
    %36 = arith.mulf %27, %35 : vector<16x16xf32>
    %cst_20 = arith.constant dense<0.000000e+00> : vector<16x4xf32>
    %37 = tpu.matmul %36, %2, %cst_20 {dimension_numbers = #tpu.dot_dimension_numbers<[1], [0], [0], [1], [0, 0, 1, 1], [], []>} : vector<16x16xf32>, vector<16x4xf32>, vector<16x4xf32> -> vector<16x4xf32>
    %c0_21 = arith.constant 0 : index
    %c0_22 = arith.constant 0 : index
    %38 = vector.load %arg5[%c0_21, %c0_22] : memref<1x4xf32, #tpu.memory_space<vmem>>, vector<1x4xf32>
    %39 = vector.broadcast %38 : vector<1x4xf32> to vector<16x4xf32>
    %40 = arith.addf %37, %39 : vector<16x4xf32>
    %cst_23 = arith.constant dense<0xFF800000> : vector<16xf32>
    %41 = vector.multi_reduction <maximumf>, %40, %cst_23 [1] : vector<16x4xf32> to vector<16xf32>
    %42 = vector.shape_cast %41 : vector<16xf32> to vector<16x1xf32>
    %43 = vector.broadcast %42 : vector<16x1xf32> to vector<16x4xf32>
    %44 = arith.subf %40, %43 : vector<16x4xf32>
    %45 = math.exp %44 : vector<16x4xf32>
    %cst_24 = arith.constant dense<0.000000e+00> : vector<16xf32>
    %46 = vector.multi_reduction <add>, %45, %cst_24 [1] : vector<16x4xf32> to vector<16xf32>
    %47 = vector.shape_cast %46 : vector<16xf32> to vector<16x1xf32>
    %48 = math.log %47 : vector<16x1xf32>
    %49 = vector.broadcast %48 : vector<16x1xf32> to vector<16x4xf32>
    %50 = arith.subf %44, %49 : vector<16x4xf32>
    %c0_25 = arith.constant 0 : index
    %c0_26 = arith.constant 0 : index
    %51 = vector.load %arg6[%c0_25, %c0_26] : memref<16x4xf32, #tpu.memory_space<vmem>>, vector<16x4xf32>
    tpu.vector_store %arg6[%c0_25, %c0_26], %50 {strides = array<i32>} : memref<16x4xf32, #tpu.memory_space<vmem>>, vector<16x4xf32>,
    return
  }
}

</mosaic_0001>

<llo_original>
// kernel: gat_net_forward.3
$region0: #{gat_net_forward.3}
  #allocation0 [shape = 'u32[]', space=smem, size = 0x4, offset = 0x4, fixed_abs, tag = 'smem constant byte address 0x4 - core index']
  #allocation1 [shape = 'u32[144,128]{1,0:T(1,128)}', space=vmem, size = 0x12000, scoped, tag = 'internal scratch']
  %s0 = inlined_call_operand.vmem [shape: f32[16,32], index: 0, kind: input, shape index: {}]
  %s1 = inlined_call_operand.vmem [shape: f32[32,4], index: 1, kind: input, shape index: {}]
  %s2 = inlined_call_operand.vmem [shape: f32[32,1], index: 2, kind: input, shape index: {}]
  %s3 = inlined_call_operand.vmem [shape: f32[32,1], index: 3, kind: input, shape index: {}]
  %s4 = inlined_call_operand.vmem [shape: f32[16,16], index: 4, kind: input, shape index: {}]
  %s5 = inlined_call_operand.vmem [shape: f32[1,4], index: 5, kind: input, shape index: {}]
  %s6 = inlined_call_operand.vmem [shape: f32[16,4], index: 6, kind: output, shape index: {}]
  %s7 = sld [smem:[#allocation0]]
  $region34: #{gat_net_forward.3} parent=0
    _
  %s9 = ssub.s32 1, %s7
  %s10 = scalar_select 0, %s9, %s7
  // Predicated region
  $region2: #{gat_net_forward.3} parent=0 // pred_check
    _
  $region3: #{gat_net_forward.3} parent=0 // pred_check_branch
    %12 = sbr.rel (0) target = $region5
  $region4: #{gat_net_forward.3} parent=0 // pred_region
    _
  $region5: #{gat_net_forward.3} parent=0 // pred_fallthru
    _
  // Predicated region
  $region6: #{gat_net_forward.3} parent=0 // pred_check
    _
  $region7: #{gat_net_forward.3} parent=0 // pred_check_branch
    %14 = sbr.rel (0) target = $region9
  $region8: #{gat_net_forward.3} parent=0 // pred_region
    _
  $region9: #{gat_net_forward.3} parent=0 // pred_fallthru
    _
  // Predicated region
  $region10: #{gat_net_forward.3} parent=0 // pred_check
    _
  $region11: #{gat_net_forward.3} parent=0 // pred_check_branch
    %16 = sbr.rel (0) target = $region13
  $region12: #{gat_net_forward.3} parent=0 // pred_region
    _
  $region13: #{gat_net_forward.3} parent=0 // pred_fallthru
    _
  // Predicated region
  $region14: #{gat_net_forward.3} parent=0 // pred_check
    _
  $region15: #{gat_net_forward.3} parent=0 // pred_check_branch
    %18 = sbr.rel (0) target = $region17
  $region16: #{gat_net_forward.3} parent=0 // pred_region
    _
  $region17: #{gat_net_forward.3} parent=0 // pred_fallthru
    _
  // Predicated region
  $region18: #{gat_net_forward.3} parent=0 // pred_check
    _
  $region19: #{gat_net_forward.3} parent=0 // pred_check_branch
    %20 = sbr.rel (0) target = $region21
  $region20: #{gat_net_forward.3} parent=0 // pred_region
    _
  $region21: #{gat_net_forward.3} parent=0 // pred_fallthru
    _
  // Predicated region
  $region22: #{gat_net_forward.3} parent=0 // pred_check
    _
  $region23: #{gat_net_forward.3} parent=0 // pred_check_branch
    %22 = sbr.rel (0) target = $region25
  $region24: #{gat_net_forward.3} parent=0 // pred_region
    _
  $region25: #{gat_net_forward.3} parent=0 // pred_fallthru
    _
  %v23 = vld [vmem:[%s0] sm:$0xff]
  %v24 = vld [vmem:[%s0 + $0x8] sm:$0xff]
  %v25 = vld [vmem:[%s1] sm:$0xff]
  %v26 = vld [vmem:[%s1 + $0x8] sm:$0xff]
  %v27 = vld [vmem:[%s1 + $0x10] sm:$0xff]
  %v28 = vld [vmem:[%s1 + $0x18] sm:$0xff]
  %vm29 = vcmask 261120
  %v31 = vsel %vm29, %v23, 0
  %v34 = vsel %vm29, %v24, 0
  %36 = vmatprep.subr.mxu0 0.0
  %37 = vmatpush1.msra.mxu0 0.0
  %38 = vmatprep.subr.mxu0 0.0
  %39 = vmatpush1.msra.mxu0 0.0
  %40 = vmatprep.subr.mxu0 0.0
  %41 = vmatpush1.msra.mxu0 0.0
  %42 = vmatprep.subr.mxu0 0.0
  %43 = vmatpush1.msra.mxu0 0.0
  %44 = vmatprep.subr.mxu0 0.0
  %45 = vmatpush1.msra.mxu0 0.0
  %46 = vmatprep.subr.mxu0 0.0
  %47 = vmatpush1.msra.mxu0 0.0
  %48 = vmatprep.subr.mxu0 0.0
  %49 = vmatpush1.msra.mxu0 0.0
  %50 = vmatprep.subr.mxu0 0.0
  %51 = vmatpush1.msra.mxu0 0.0
  %52 = vmatprep.subr.mxu0 0.0
  %53 = vmatpush1.msra.mxu0 0.0
  %54 = vmatprep.subr.mxu0 0.0
  %55 = vmatpush1.msra.mxu0 0.0
  %56 = vmatprep.subr.mxu0 0.0
  %57 = vmatpush1.msra.mxu0 0.0
  %58 = vmatprep.subr.mxu0 0.0
  %59 = vmatpush1.msra.mxu0 0.0
  %60 = vmatprep.subr.mxu0 0.0
  %61 = vmatpush1.msra.mxu0 %v28
  %62 = vmatprep.subr.mxu0 0.0
  %63 = vmatpush1.msra.mxu0 %v27
  %64 = vmatprep.subr.mxu0 0.0
  %65 = vmatpush1.msra.mxu0 %v26
  %66 = vmatprep.subr.mxu0 0.0
  %67 = vmatpush1.msra.mxu0 %v25
  %68 = vmatprep.subr.mxu0 0.0
  %69 = vmatpush2.msra.mxu0 0.0
  %70 = vmatprep.subr.mxu0 0.0
  %71 = vmatpush2.msra.mxu0 0.0
  %72 = vmatprep.subr.mxu0 0.0
  %73 = vmatpush2.msra.mxu0 0.0
  %74 = vmatprep.subr.mxu0 0.0
  %75 = vmatpush2.msra.mxu0 0.0
  %76 = vmatprep.subr.mxu0 0.0
  %77 = vmatpush2.msra.mxu0 0.0
  %78 = vmatprep.subr.mxu0 0.0
  %79 = vmatpush2.msra.mxu0 0.0
  %80 = vmatprep.subr.mxu0 0.0
  %81 = vmatpush2.msra.mxu0 0.0
  %82 = vmatprep.subr.mxu0 0.0
  %83 = vmatpush2.msra.mxu0 0.0
  %84 = vmatprep.subr.mxu0 0.0
  %85 = vmatpush2.msra.mxu0 0.0
  %86 = vmatprep.subr.mxu0 0.0
  %87 = vmatpush2.msra.mxu0 0.0
  %88 = vmatprep.subr.mxu0 0.0
  %89 = vmatpush2.msra.mxu0 0.0
  %90 = vmatprep.subr.mxu0 0.0
  %91 = vmatpush2.msra.mxu0 0.0
  %92 = vmatprep.subr.mxu0 0.0
  %93 = vmatpush2.msra.mxu0 0.0
  %94 = vmatprep.subr.mxu0 0.0
  %95 = vmatpush2.msra.mxu0 0.0
  %96 = vmatprep.subr.mxu0 0.0
  %97 = vmatpush2.msra.mxu0 0.0
  %98 = vmatprep.subr.mxu0 0.0
  %99 = vmatpush2.msra.mxu0 0.0
  %100 = vmatprep.mubr.f32.mxu0 0.0
  %101 = vmatmul.mubr.f32.gmra.mxu0 %v31
  %v102 = vpop.f32.mrf.mxu0
  %v103 = vadd.f32 0.0, %v102
  %v104 = vpop.f32.mrf.mxu0
  %105 = vmatprep.mubr.f32.mxu0 0.0
  %106 = vmatmul.mubr.f32.gmra.mxu0 %v34
  %v107 = vpop.f32.mrf.mxu0
  %v108 = vadd.f32 0.0, %v107
  %v109 = vpop.f32.mrf.mxu0
  %110 = vdwg.mxu0
  %v111 = vld [vmem:[%s2] sm:$0xff]
  %v112 = vld [vmem:[%s2 + $0x8] sm:$0xff]
  %v113 = vld [vmem:[%s2 + $0x10] sm:$0xff]
  %v114 = vld [vmem:[%s2 + $0x18] sm:$0xff]
  %115 = vmatprep.subr.mxu0 0.0
  %116 = vmatpush1.msra.mxu0 0.0
  %117 = vmatprep.subr.mxu0 0.0
  %118 = vmatpush1.msra.mxu0 0.0
  %119 = vmatprep.subr.mxu0 0.0
  %120 = vmatpush1.msra.mxu0 0.0
  %121 = vmatprep.subr.mxu0 0.0
  %122 = vmatpush1.msra.mxu0 0.0
  %123 = vmatprep.subr.mxu0 0.0
  %124 = vmatpush1.msra.mxu0 0.0
  %125 = vmatprep.subr.mxu0 0.0
  %126 = vmatpush1.msra.mxu0 0.0
  %127 = vmatprep.subr.mxu0 0.0
  %128 = vmatpush1.msra.mxu0 0.0
  %129 = vmatprep.subr.mxu0 0.0
  %130 = vmatpush1.msra.mxu0 0.0
  %131 = vmatprep.subr.mxu0 0.0
  %132 = vmatpush1.msra.mxu0 0.0
  %133 = vmatprep.subr.mxu0 0.0
  %134 = vmatpush1.msra.mxu0 0.0
  %135 = vmatprep.subr.mxu0 0.0
  %136 = vmatpush1.msra.mxu0 0.0
  %137 = vmatprep.subr.mxu0 0.0
  %138 = vmatpush1.msra.mxu0 0.0
  %139 = vmatprep.subr.mxu0 0.0
  %140 = vmatpush1.msra.mxu0 %v114
  %141 = vmatprep.subr.mxu0 0.0
  %142 = vmatpush1.msra.mxu0 %v113
  %143 = vmatprep.subr.mxu0 0.0
  %144 = vmatpush1.msra.mxu0 %v112
  %145 = vmatprep.subr.mxu0 0.0
  %146 = vmatpush1.msra.mxu0 %v111
  %147 = vmatprep.subr.mxu0 0.0
  %148 = vmatpush2.msra.mxu0 0.0
  %149 = vmatprep.subr.mxu0 0.0
  %150 = vmatpush2.msra.mxu0 0.0
  %151 = vmatprep.subr.mxu0 0.0
  %152 = vmatpush2.msra.mxu0 0.0
  %153 = vmatprep.subr.mxu0 0.0
  %154 = vmatpush2.msra.mxu0 0.0
  %155 = vmatprep.subr.mxu0 0.0
  %156 = vmatpush2.msra.mxu0 0.0
  %157 = vmatprep.subr.mxu0 0.0
  %158 = vmatpush2.msra.mxu0 0.0
  %159 = vmatprep.subr.mxu0 0.0
  %160 = vmatpush2.msra.mxu0 0.0
  %161 = vmatprep.subr.mxu0 0.0
  %162 = vmatpush2.msra.mxu0 0.0
  %163 = vmatprep.subr.mxu0 0.0
  %164 = vmatpush2.msra.mxu0 0.0
  %165 = vmatprep.subr.mxu0 0.0
  %166 = vmatpush2.msra.mxu0 0.0
  %167 = vmatprep.subr.mxu0 0.0
  %168 = vmatpush2.msra.mxu0 0.0
  %169 = vmatprep.subr.mxu0 0.0
  %170 = vmatpush2.msra.mxu0 0.0
  %171 = vmatprep.subr.mxu0 0.0
  %172 = vmatpush2.msra.mxu0 0.0
  %173 = vmatprep.subr.mxu0 0.0
  %174 = vmatpush2.msra.mxu0 0.0
  %175 = vmatprep.subr.mxu0 0.0
  %176 = vmatpush2.msra.mxu0 0.0
  %177 = vmatprep.subr.mxu0 0.0
  %178 = vmatpush2.msra.mxu0 0.0
  %179 = vmatprep.mubr.f32.mxu0 0.0
  %180 = vmatmul.mubr.f32.gmra.mxu0 %v31
  %v181 = vpop.f32.mrf.mxu0
  %v182 = vadd.f32 0.0, %v181
  %v183 = vpop.f32.mrf.mxu0
  %184 = vmatprep.mubr.f32.mxu0 0.0
  %185 = vmatmul.mubr.f32.gmra.mxu0 %v34
  %v186 = vpop.f32.mrf.mxu0
  %v187 = vadd.f32 0.0, %v186
  %v188 = vpop.f32.mrf.mxu0
  %189 = vdwg.mxu0
  %v190 = vld [vmem:[%s3] sm:$0xff]
  %v191 = vld [vmem:[%s3 + $0x8] sm:$0xff]
  %v192 = vld [vmem:[%s3 + $0x10] sm:$0xff]
  %v193 = vld [vmem:[%s3 + $0x18] sm:$0xff]
  %194 = vmatprep.subr.mxu0 0.0
  %195 = vmatpush1.msra.mxu0 0.0
  %196 = vmatprep.subr.mxu0 0.0
  %197 = vmatpush1.msra.mxu0 0.0
  %198 = vmatprep.subr.mxu0 0.0
  %199 = vmatpush1.msra.mxu0 0.0
  %200 = vmatprep.subr.mxu0 0.0
  %201 = vmatpush1.msra.mxu0 0.0
  %202 = vmatprep.subr.mxu0 0.0
  %203 = vmatpush1.msra.mxu0 0.0
  %204 = vmatprep.subr.mxu0 0.0
  %205 = vmatpush1.msra.mxu0 0.0
  %206 = vmatprep.subr.mxu0 0.0
  %207 = vmatpush1.msra.mxu0 0.0
  %208 = vmatprep.subr.mxu0 0.0
  %209 = vmatpush1.msra.mxu0 0.0
  %210 = vmatprep.subr.mxu0 0.0
  %211 = vmatpush1.msra.mxu0 0.0
  %212 = vmatprep.subr.mxu0 0.0
  %213 = vmatpush1.msra.mxu0 0.0
  %214 = vmatprep.subr.mxu0 0.0
  %215 = vmatpush1.msra.mxu0 0.0
  %216 = vmatprep.subr.mxu0 0.0
  %217 = vmatpush1.msra.mxu0 0.0
  %218 = vmatprep.subr.mxu0 0.0
  %219 = vmatpush1.msra.mxu0 %v193
  %220 = vmatprep.subr.mxu0 0.0
  %221 = vmatpush1.msra.mxu0 %v192
  %222 = vmatprep.subr.mxu0 0.0
  %223 = vmatpush1.msra.mxu0 %v191
  %224 = vmatprep.subr.mxu0 0.0
  %225 = vmatpush1.msra.mxu0 %v190
  %226 = vmatprep.subr.mxu0 0.0
  %227 = vmatpush2.msra.mxu0 0.0
  %228 = vmatprep.subr.mxu0 0.0
  %229 = vmatpush2.msra.mxu0 0.0
  %230 = vmatprep.subr.mxu0 0.0
  %231 = vmatpush2.msra.mxu0 0.0
  %232 = vmatprep.subr.mxu0 0.0
  %233 = vmatpush2.msra.mxu0 0.0
  %234 = vmatprep.subr.mxu0 0.0
  %235 = vmatpush2.msra.mxu0 0.0
  %236 = vmatprep.subr.mxu0 0.0
  %237 = vmatpush2.msra.mxu0 0.0
  %238 = vmatprep.subr.mxu0 0.0
  %239 = vmatpush2.msra.mxu0 0.0
  %240 = vmatprep.subr.mxu0 0.0
  %241 = vmatpush2.msra.mxu0 0.0
  %242 = vmatprep.subr.mxu0 0.0
  %243 = vmatpush2.msra.mxu0 0.0
  %244 = vmatprep.subr.mxu0 0.0
  %245 = vmatpush2.msra.mxu0 0.0
  %246 = vmatprep.subr.mxu0 0.0
  %247 = vmatpush2.msra.mxu0 0.0
  %248 = vmatprep.subr.mxu0 0.0
  %249 = vmatpush2.msra.mxu0 0.0
  %250 = vmatprep.subr.mxu0 0.0
  %251 = vmatpush2.msra.mxu0 0.0
  %252 = vmatprep.subr.mxu0 0.0
  %253 = vmatpush2.msra.mxu0 0.0
  %254 = vmatprep.subr.mxu0 0.0
  %255 = vmatpush2.msra.mxu0 0.0
  %256 = vmatprep.subr.mxu0 0.0
  %257 = vmatpush2.msra.mxu0 0.0
  %258 = vmatprep.mubr.f32.mxu0 0.0
  %259 = vmatmul.mubr.f32.gmra.mxu0 %v31
  %v260 = vpop.f32.mrf.mxu0
  %v261 = vadd.f32 0.0, %v260
  %v262 = vpop.f32.mrf.mxu0
  %263 = vmatprep.mubr.f32.mxu0 0.0
  %264 = vmatmul.mubr.f32.gmra.mxu0 %v34
  %v265 = vpop.f32.mrf.mxu0
  %v266 = vadd.f32 0.0, %v265
  %v267 = vpop.f32.mrf.mxu0
  %268 = vdwg.mxu0
  %v269 = vld [vmem:[%s4] sm:$0xff]
  %v270 = vld [vmem:[%s4 + $0x8] sm:$0xff]
  %vm271 = vcmp.gt.f32.partialorder %v269, 0.0
  %vm272 = vcmp.gt.f32.partialorder %v270, 0.0
  %273 = vxpose.xlu0.b32.start [1/16] %v182, 128
  %274 = vxpose.xlu0.b32.cont [2/16] %v187, 128
  %275 = vxpose.xlu0.b32.cont [3/16] 0.0, 128
  %276 = vxpose.xlu0.b32.cont [4/16] 0.0, 128
  %277 = vxpose.xlu0.b32.cont [5/16] 0.0, 128
  %278 = vxpose.xlu0.b32.cont [6/16] 0.0, 128
  %279 = vxpose.xlu0.b32.cont [7/16] 0.0, 128
  %280 = vxpose.xlu0.b32.cont [8/16] 0.0, 128
  %281 = vxpose.xlu0.b32.cont [9/16] 0.0, 128
  %282 = vxpose.xlu0.b32.cont [10/16] 0.0, 128
  %283 = vxpose.xlu0.b32.cont [11/16] 0.0, 128
  %284 = vxpose.xlu0.b32.cont [12/16] 0.0, 128
  %285 = vxpose.xlu0.b32.cont [13/16] 0.0, 128
  %286 = vxpose.xlu0.b32.cont [14/16] 0.0, 128
  %287 = vxpose.xlu0.b32.cont [15/16] 0.0, 128
  %288 = vxpose.xlu0.b32.end [16/16] 0.0, 128
  %v289 = vpop.trf.xlu0
  %v290 = vpop.trf.xlu0
  %v291 = vpop.trf.xlu0
  %v292 = vpop.trf.xlu0
  %v293 = vpop.trf.xlu0
  %v294 = vpop.trf.xlu0
  %v295 = vpop.trf.xlu0
  %v296 = vpop.trf.xlu0
  %v297 = vpop.trf.xlu0
  %v298 = vpop.trf.xlu0
  %v299 = vpop.trf.xlu0
  %v300 = vpop.trf.xlu0
  %v301 = vpop.trf.xlu0
  %v302 = vpop.trf.xlu0
  %v303 = vpop.trf.xlu0
  %v304 = vpop.trf.xlu0
  %306 = vset.pattern.permute.xlu0 0
  %307 = vperm.xlu0 %306, %v261
  %v308 = vpop.permute.xlu0 %307
  %311 = vset.pattern.permute.xlu0 0
  %312 = vperm.xlu0 %311, %v266
  %v313 = vpop.permute.xlu0 %312
  %v315 = vlaneseq
  %v316 = vshrl.u32 %v315, 7
  %v317 = vsub.s32 0, %v316
  %v318 = vrot.slane %v289, %v317
  %v319 = vadd.f32 %v308, %v318
  %v320 = vadd.f32 %v313, %v318
  %vm321 = vcmp.gt.f32.partialorder %v319, 0.0
  %vm322 = vcmp.gt.f32.partialorder %v320, 0.0
  %v323 = vmul.f32 %v319, 0.2
  %v324 = vmul.f32 %v320, 0.2
  %v325 = vsel %vm321, %v319, %v323
  %v326 = vsel %vm322, %v320, %v324
  %v327 = vsel %vm271, %v325, -1e+30
  %v328 = vsel %vm272, %v326, -1e+30
  %vm329 = vcmask 130048
  %v330 = vsel %vm329, %v327, -inf
  %331 = vmax.xlane.f32.xlu0 %v330
  %v332 = vpop.xlane.xlu0 %331
  %v333 = vsel %vm329, %v328, -inf
  %334 = vmax.xlane.f32.xlu0 %v333
  %v335 = vpop.xlane.xlu0 %334
  %v336 = vsub.f32 %v327, %v332
  %v337 = vsub.f32 %v328, %v335
  %v338 = vmul.f32 %v336, 1.442695
  %v339 = vpow.pop %v338
  %v340 = vmul.f32 %v337, 1.442695
  %v341 = vpow.pop %v340
  %v342 = vsel %vm271, %v339, 0.0
  %v343 = vsel %vm272, %v341, 0.0
  %v344 = vsel %vm329, %v342, 0.0
  %345 = vadd.xlane.f32.xlu0 %v344
  %v346 = vpop.xlane.xlu0 %345
  %v347 = vsel %vm329, %v343, 0.0
  %348 = vadd.xlane.f32.xlu0 %v347
  %v349 = vpop.xlane.xlu0 %348
  %vm350 = vcmp.eq.f32.partialorder %v346, 0.0
  %vm351 = vcmp.eq.f32.partialorder %v349, 0.0
  %v352 = vsel %vm350, 1.0, %v346
  %v353 = vsel %vm351, 1.0, %v349
  %v354 = vrcp.pop %v352
  %v355 = vrcp.pop %v353
  %v356 = vmul.f32 %v342, %v354
  %v357 = vmul.f32 %v343, %v355
  %v358 = vld [vmem:[%s5] sm:$0x1]
  %v360 = vlaneseq
  %v361 = vshrl.u32 %v360, 7
  %v362 = vsub.s32 0, %v361
  %v363 = vrot.slane %v358, %v362
  %v366 = vsel %vm329, %v356, 0
  %v369 = vsel %vm329, %v357, 0
  %371 = vmatprep.subr.mxu0 0.0
  %372 = vmatpush1.msra.mxu0 0.0
  %373 = vmatprep.subr.mxu0 0.0
  %374 = vmatpush1.msra.mxu0 0.0
  %375 = vmatprep.subr.mxu0 0.0
  %376 = vmatpush1.msra.mxu0 0.0
  %377 = vmatprep.subr.mxu0 0.0
  %378 = vmatpush1.msra.mxu0 0.0
  %379 = vmatprep.subr.mxu0 0.0
  %380 = vmatpush1.msra.mxu0 0.0
  %381 = vmatprep.subr.mxu0 0.0
  %382 = vmatpush1.msra.mxu0 0.0
  %383 = vmatprep.subr.mxu0 0.0
  %384 = vmatpush1.msra.mxu0 0.0
  %385 = vmatprep.subr.mxu0 0.0
  %386 = vmatpush1.msra.mxu0 0.0
  %387 = vmatprep.subr.mxu0 0.0
  %388 = vmatpush1.msra.mxu0 0.0
  %389 = vmatprep.subr.mxu0 0.0
  %390 = vmatpush1.msra.mxu0 0.0
  %391 = vmatprep.subr.mxu0 0.0
  %392 = vmatpush1.msra.mxu0 0.0
  %393 = vmatprep.subr.mxu0 0.0
  %394 = vmatpush1.msra.mxu0 0.0
  %395 = vmatprep.subr.mxu0 0.0
  %396 = vmatpush1.msra.mxu0 0.0
  %397 = vmatprep.subr.mxu0 0.0
  %398 = vmatpush1.msra.mxu0 0.0
  %399 = vmatprep.subr.mxu0 0.0
  %400 = vmatpush1.msra.mxu0 %v108
  %401 = vmatprep.subr.mxu0 0.0
  %402 = vmatpush1.msra.mxu0 %v103
  %403 = vmatprep.subr.mxu0 0.0
  %404 = vmatpush2.msra.mxu0 0.0
  %405 = vmatprep.subr.mxu0 0.0
  %406 = vmatpush2.msra.mxu0 0.0
  %407 = vmatprep.subr.mxu0 0.0
  %408 = vmatpush2.msra.mxu0 0.0
  %409 = vmatprep.subr.mxu0 0.0
  %410 = vmatpush2.msra.mxu0 0.0
  %411 = vmatprep.subr.mxu0 0.0
  %412 = vmatpush2.msra.mxu0 0.0
  %413 = vmatprep.subr.mxu0 0.0
  %414 = vmatpush2.msra.mxu0 0.0
  %415 = vmatprep.subr.mxu0 0.0
  %416 = vmatpush2.msra.mxu0 0.0
  %417 = vmatprep.subr.mxu0 0.0
  %418 = vmatpush2.msra.mxu0 0.0
  %419 = vmatprep.subr.mxu0 0.0
  %420 = vmatpush2.msra.mxu0 0.0
  %421 = vmatprep.subr.mxu0 0.0
  %422 = vmatpush2.msra.mxu0 0.0
  %423 = vmatprep.subr.mxu0 0.0
  %424 = vmatpush2.msra.mxu0 0.0
  %425 = vmatprep.subr.mxu0 0.0
  %426 = vmatpush2.msra.mxu0 0.0
  %427 = vmatprep.subr.mxu0 0.0
  %428 = vmatpush2.msra.mxu0 0.0
  %429 = vmatprep.subr.mxu0 0.0
  %430 = vmatpush2.msra.mxu0 0.0
  %431 = vmatprep.subr.mxu0 0.0
  %432 = vmatpush2.msra.mxu0 0.0
  %433 = vmatprep.subr.mxu0 0.0
  %434 = vmatpush2.msra.mxu0 0.0
  %435 = vmatprep.mubr.f32.mxu0 0.0
  %436 = vmatmul.mubr.f32.gmra.mxu0 %v366
  %v437 = vpop.f32.mrf.mxu0
  %v438 = vadd.f32 %v363, %v437
  %v439 = vpop.f32.mrf.mxu0
  %440 = vmatprep.mubr.f32.mxu0 0.0
  %441 = vmatmul.mubr.f32.gmra.mxu0 %v369
  %v442 = vpop.f32.mrf.mxu0
  %v443 = vadd.f32 %v363, %v442
  %v444 = vpop.f32.mrf.mxu0
  %445 = vdwg.mxu0
  %vm446 = vcmask 31744
  %v447 = vsel %vm446, %v438, -inf
  %448 = vmax.xlane.f32.xlu0 %v447
  %v449 = vpop.xlane.xlu0 %448
  %v450 = vsel %vm446, %v443, -inf
  %451 = vmax.xlane.f32.xlu0 %v450
  %v452 = vpop.xlane.xlu0 %451
  %v453 = vsub.f32 %v438, %v449
  %v454 = vsub.f32 %v443, %v452
  %v455 = vmul.f32 %v453, 1.442695
  %v456 = vpow.pop %v455
  %v457 = vmul.f32 %v454, 1.442695
  %v458 = vpow.pop %v457
  %v459 = vsel %vm446, %v456, 0.0
  %460 = vadd.xlane.f32.xlu0 %v459
  %v461 = vpop.xlane.xlu0 %460
  %v462 = vsel %vm446, %v458, 0.0
  %463 = vadd.xlane.f32.xlu0 %v462
  %v464 = vpop.xlane.xlu0 %463
  %v465 = vlog2.pop %v461
  %v466 = vmul.f32 %v465, 0.6931472
  %v467 = vlog2.pop %v464
  %v468 = vmul.f32 %v467, 0.6931472
  %v469 = vsub.f32 %v453, %v466
  %v470 = vsub.f32 %v454, %v468
  %471 = vst.msk [vmem:[%s6] sm:$0xff] %vm446, %v469
  %472 = vst.msk [vmem:[%s6 + $0x8] sm:$0xff] %vm446, %v470
  // Predicated region
  $region26: #{gat_net_forward.3} parent=0 // pred_check
    _
  $region27: #{gat_net_forward.3} parent=0 // pred_check_branch
    %474 = sbr.rel (0) target = $region29
  $region28: #{gat_net_forward.3} parent=0 // pred_region
    _
  $region29: #{gat_net_forward.3} parent=0 // pred_fallthru
    _
  // Predicated region
  $region30: #{gat_net_forward.3} parent=0 // pred_check
    _
  $region31: #{gat_net_forward.3} parent=0 // pred_check_branch
    %476 = sbr.rel (0) target = $region33
  $region32: #{gat_net_forward.3} parent=0 // pred_region
    _
  $region33: #{gat_net_forward.3} parent=0 // pred_fallthru
    _

// kernel: gat_net_forward.2
$region0: #{gat_net_forward.2}
  #allocation0 [shape = 'u32[]', space=smem, size = 0x4, offset = 0x4, fixed_abs, tag = 'smem constant byte address 0x4 - core index']
  #allocation1 [shape = 'u32[144,128]{1,0:T(1,128)}', space=vmem, size = 0x12000, scoped, tag = 'internal scratch']
  %s0 = inlined_call_operand.vmem [shape: f32[16,8], index: 0, kind: input, shape index: {}]
  %s1 = inlined_call_operand.vmem [shape: f32[8,32], index: 1, kind: input, shape index: {}]
  %s2 = inlined_call_operand.vmem [shape: f32[8,4], index: 2, kind: input, shape index: {}]
  %s3 = inlined_call_operand.vmem [shape: f32[8,4], index: 3, kind: input, shape index: {}]
  %s4 = inlined_call_operand.vmem [shape: f32[16,16], index: 4, kind: input, shape index: {}]
  %s5 = inlined_call_operand.vmem [shape: f32[1,32], index: 5, kind: input, shape index: {}]
  %s6 = inlined_call_operand.vmem [shape: f32[16,32], index: 6, kind: output, shape index: {}]
  %s7 = sld [smem:[#allocation0]]
  $region34: #{gat_net_forward.2} parent=0
    _
  %s9 = ssub.s32 1, %s7
  %s10 = scalar_select 0, %s9, %s7
  // Predicated region
  $region2: #{gat_net_forward.2} parent=0 // pred_check
    _
  $region3: #{gat_net_forward.2} parent=0 // pred_check_branch
    %12 = sbr.rel (0) target = $region5
  $region4: #{gat_net_forward.2} parent=0 // pred_region
    _
  $region5: #{gat_net_forward.2} parent=0 // pred_fallthru
    _
  // Predicated region
  $region6: #{gat_net_forward.2} parent=0 // pred_check
    _
  $region7: #{gat_net_forward.2} parent=0 // pred_check_branch
    %14 = sbr.rel (0) target = $region9
  $region8: #{gat_net_forward.2} parent=0 // pred_region
    _
  $region9: #{gat_net_forward.2} parent=0 // pred_fallthru
    _
  // Predicated region
  $region10: #{gat_net_forward.2} parent=0 // pred_check
    _
  $region11: #{gat_net_forward.2} parent=0 // pred_check_branch
    %16 = sbr.rel (0) target = $region13
  $region12: #{gat_net_forward.2} parent=0 // pred_region
    _
  $region13: #{gat_net_forward.2} parent=0 // pred_fallthru
    _
  // Predicated region
  $region14: #{gat_net_forward.2} parent=0 // pred_check
    _
  $region15: #{gat_net_forward.2} parent=0 // pred_check_branch
    %18 = sbr.rel (0) target = $region17
  $region16: #{gat_net_forward.2} parent=0 // pred_region
    _
  $region17: #{gat_net_forward.2} parent=0 // pred_fallthru
    _
  // Predicated region
  $region18: #{gat_net_forward.2} parent=0 // pred_check
    _
  $region19: #{gat_net_forward.2} parent=0 // pred_check_branch
    %20 = sbr.rel (0) target = $region21
  $region20: #{gat_net_forward.2} parent=0 // pred_region
    _
  $region21: #{gat_net_forward.2} parent=0 // pred_fallthru
    _
  // Predicated region
  $region22: #{gat_net_forward.2} parent=0 // pred_check
    _
  $region23: #{gat_net_forward.2} parent=0 // pred_check_branch
    %22 = sbr.rel (0) target = $region25
  $region24: #{gat_net_forward.2} parent=0 // pred_region
    _
  $region25: #{gat_net_forward.2} parent=0 // pred_fallthru
    _
  %v23 = vld [vmem:[%s0] sm:$0xff]
  %v24 = vld [vmem:[%s0 + $0x8] sm:$0xff]
  %v25 = vld [vmem:[%s1] sm:$0xff]
  %vm26 = vcmask 64512
  %v28 = vsel %vm26, %v23, 0
  %v31 = vsel %vm26, %v24, 0
  %33 = vmatprep.subr.mxu0 0.0
  %34 = vmatpush1.msra.mxu0 0.0
  %35 = vmatprep.subr.mxu0 0.0
  %36 = vmatpush1.msra.mxu0 0.0
  %37 = vmatprep.subr.mxu0 0.0
  %38 = vmatpush1.msra.mxu0 0.0
  %39 = vmatprep.subr.mxu0 0.0
  %40 = vmatpush1.msra.mxu0 0.0
  %41 = vmatprep.subr.mxu0 0.0
  %42 = vmatpush1.msra.mxu0 0.0
  %43 = vmatprep.subr.mxu0 0.0
  %44 = vmatpush1.msra.mxu0 0.0
  %45 = vmatprep.subr.mxu0 0.0
  %46 = vmatpush1.msra.mxu0 0.0
  %47 = vmatprep.subr.mxu0 0.0
  %48 = vmatpush1.msra.mxu0 0.0
  %49 = vmatprep.subr.mxu0 0.0
  %50 = vmatpush1.msra.mxu0 0.0
  %51 = vmatprep.subr.mxu0 0.0
  %52 = vmatpush1.msra.mxu0 0.0
  %53 = vmatprep.subr.mxu0 0.0
  %54 = vmatpush1.msra.mxu0 0.0
  %55 = vmatprep.subr.mxu0 0.0
  %56 = vmatpush1.msra.mxu0 0.0
  %57 = vmatprep.subr.mxu0 0.0
  %58 = vmatpush1.msra.mxu0 0.0
  %59 = vmatprep.subr.mxu0 0.0
  %60 = vmatpush1.msra.mxu0 0.0
  %61 = vmatprep.subr.mxu0 0.0
  %62 = vmatpush1.msra.mxu0 0.0
  %63 = vmatprep.subr.mxu0 0.0
  %64 = vmatpush1.msra.mxu0 %v25
  %65 = vmatprep.subr.mxu0 0.0
  %66 = vmatpush2.msra.mxu0 0.0
  %67 = vmatprep.subr.mxu0 0.0
  %68 = vmatpush2.msra.mxu0 0.0
  %69 = vmatprep.subr.mxu0 0.0
  %70 = vmatpush2.msra.mxu0 0.0
  %71 = vmatprep.subr.mxu0 0.0
  %72 = vmatpush2.msra.mxu0 0.0
  %73 = vmatprep.subr.mxu0 0.0
  %74 = vmatpush2.msra.mxu0 0.0
  %75 = vmatprep.subr.mxu0 0.0
  %76 = vmatpush2.msra.mxu0 0.0
  %77 = vmatprep.subr.mxu0 0.0
  %78 = vmatpush2.msra.mxu0 0.0
  %79 = vmatprep.subr.mxu0 0.0
  %80 = vmatpush2.msra.mxu0 0.0
  %81 = vmatprep.subr.mxu0 0.0
  %82 = vmatpush2.msra.mxu0 0.0
  %83 = vmatprep.subr.mxu0 0.0
  %84 = vmatpush2.msra.mxu0 0.0
  %85 = vmatprep.subr.mxu0 0.0
  %86 = vmatpush2.msra.mxu0 0.0
  %87 = vmatprep.subr.mxu0 0.0
  %88 = vmatpush2.msra.mxu0 0.0
  %89 = vmatprep.subr.mxu0 0.0
  %90 = vmatpush2.msra.mxu0 0.0
  %91 = vmatprep.subr.mxu0 0.0
  %92 = vmatpush2.msra.mxu0 0.0
  %93 = vmatprep.subr.mxu0 0.0
  %94 = vmatpush2.msra.mxu0 0.0
  %95 = vmatprep.subr.mxu0 0.0
  %96 = vmatpush2.msra.mxu0 0.0
  %97 = vmatprep.mubr.f32.mxu0 0.0
  %98 = vmatmul.mubr.f32.gmra.mxu0 %v28
  %v99 = vpop.f32.mrf.mxu0
  %v100 = vadd.f32 0.0, %v99
  %v101 = vpop.f32.mrf.mxu0
  %102 = vmatprep.mubr.f32.mxu0 0.0
  %103 = vmatmul.mubr.f32.gmra.mxu0 %v31
  %v104 = vpop.f32.mrf.mxu0
  %v105 = vadd.f32 0.0, %v104
  %v106 = vpop.f32.mrf.mxu0
  %107 = vdwg.mxu0
  %v108 = vld [vmem:[%s2] sm:$0xff]
  %109 = vmatprep.subr.mxu0 0.0
  %110 = vmatpush1.msra.mxu0 0.0
  %111 = vmatprep.subr.mxu0 0.0
  %112 = vmatpush1.msra.mxu0 0.0
  %113 = vmatprep.subr.mxu0 0.0
  %114 = vmatpush1.msra.mxu0 0.0
  %115 = vmatprep.subr.mxu0 0.0
  %116 = vmatpush1.msra.mxu0 0.0
  %117 = vmatprep.subr.mxu0 0.0
  %118 = vmatpush1.msra.mxu0 0.0
  %119 = vmatprep.subr.mxu0 0.0
  %120 = vmatpush1.msra.mxu0 0.0
  %121 = vmatprep.subr.mxu0 0.0
  %122 = vmatpush1.msra.mxu0 0.0
  %123 = vmatprep.subr.mxu0 0.0
  %124 = vmatpush1.msra.mxu0 0.0
  %125 = vmatprep.subr.mxu0 0.0
  %126 = vmatpush1.msra.mxu0 0.0
  %127 = vmatprep.subr.mxu0 0.0
  %128 = vmatpush1.msra.mxu0 0.0
  %129 = vmatprep.subr.mxu0 0.0
  %130 = vmatpush1.msra.mxu0 0.0
  %131 = vmatprep.subr.mxu0 0.0
  %132 = vmatpush1.msra.mxu0 0.0
  %133 = vmatprep.subr.mxu0 0.0
  %134 = vmatpush1.msra.mxu0 0.0
  %135 = vmatprep.subr.mxu0 0.0
  %136 = vmatpush1.msra.mxu0 0.0
  %137 = vmatprep.subr.mxu0 0.0
  %138 = vmatpush1.msra.mxu0 0.0
  %139 = vmatprep.subr.mxu0 0.0
  %140 = vmatpush1.msra.mxu0 %v108
  %141 = vmatprep.subr.mxu0 0.0
  %142 = vmatpush2.msra.mxu0 0.0
  %143 = vmatprep.subr.mxu0 0.0
  %144 = vmatpush2.msra.mxu0 0.0
  %145 = vmatprep.subr.mxu0 0.0
  %146 = vmatpush2.msra.mxu0 0.0
  %147 = vmatprep.subr.mxu0 0.0
  %148 = vmatpush2.msra.mxu0 0.0
  %149 = vmatprep.subr.mxu0 0.0
  %150 = vmatpush2.msra.mxu0 0.0
  %151 = vmatprep.subr.mxu0 0.0
  %152 = vmatpush2.msra.mxu0 0.0
  %153 = vmatprep.subr.mxu0 0.0
  %154 = vmatpush2.msra.mxu0 0.0
  %155 = vmatprep.subr.mxu0 0.0
  %156 = vmatpush2.msra.mxu0 0.0
  %157 = vmatprep.subr.mxu0 0.0
  %158 = vmatpush2.msra.mxu0 0.0
  %159 = vmatprep.subr.mxu0 0.0
  %160 = vmatpush2.msra.mxu0 0.0
  %161 = vmatprep.subr.mxu0 0.0
  %162 = vmatpush2.msra.mxu0 0.0
  %163 = vmatprep.subr.mxu0 0.0
  %164 = vmatpush2.msra.mxu0 0.0
  %165 = vmatprep.subr.mxu0 0.0
  %166 = vmatpush2.msra.mxu0 0.0
  %167 = vmatprep.subr.mxu0 0.0
  %168 = vmatpush2.msra.mxu0 0.0
  %169 = vmatprep.subr.mxu0 0.0
  %170 = vmatpush2.msra.mxu0 0.0
  %171 = vmatprep.subr.mxu0 0.0
  %172 = vmatpush2.msra.mxu0 0.0
  %173 = vmatprep.mubr.f32.mxu0 0.0
  %174 = vmatmul.mubr.f32.gmra.mxu0 %v28
  %v175 = vpop.f32.mrf.mxu0
  %v176 = vadd.f32 0.0, %v175
  %v177 = vpop.f32.mrf.mxu0
  %178 = vmatprep.mubr.f32.mxu0 0.0
  %179 = vmatmul.mubr.f32.gmra.mxu0 %v31
  %v180 = vpop.f32.mrf.mxu0
  %v181 = vadd.f32 0.0, %v180
  %v182 = vpop.f32.mrf.mxu0
  %183 = vdwg.mxu0
  %v184 = vld [vmem:[%s3] sm:$0xff]
  %185 = vmatprep.subr.mxu0 0.0
  %186 = vmatpush1.msra.mxu0 0.0
  %187 = vmatprep.subr.mxu0 0.0
  %188 = vmatpush1.msra.mxu0 0.0
  %189 = vmatprep.subr.mxu0 0.0
  %190 = vmatpush1.msra.mxu0 0.0
  %191 = vmatprep.subr.mxu0 0.0
  %192 = vmatpush1.msra.mxu0 0.0
  %193 = vmatprep.subr.mxu0 0.0
  %194 = vmatpush1.msra.mxu0 0.0
  %195 = vmatprep.subr.mxu0 0.0
  %196 = vmatpush1.msra.mxu0 0.0
  %197 = vmatprep.subr.mxu0 0.0
  %198 = vmatpush1.msra.mxu0 0.0
  %199 = vmatprep.subr.mxu0 0.0
  %200 = vmatpush1.msra.mxu0 0.0
  %201 = vmatprep.subr.mxu0 0.0
  %202 = vmatpush1.msra.mxu0 0.0
  %203 = vmatprep.subr.mxu0 0.0
  %204 = vmatpush1.msra.mxu0 0.0
  %205 = vmatprep.subr.mxu0 0.0
  %206 = vmatpush1.msra.mxu0 0.0
  %207 = vmatprep.subr.mxu0 0.0
  %208 = vmatpush1.msra.mxu0 0.0
  %209 = vmatprep.subr.mxu0 0.0
  %210 = vmatpush1.msra.mxu0 0.0
  %211 = vmatprep.subr.mxu0 0.0
  %212 = vmatpush1.msra.mxu0 0.0
  %213 = vmatprep.subr.mxu0 0.0
  %214 = vmatpush1.msra.mxu0 0.0
  %215 = vmatprep.subr.mxu0 0.0
  %216 = vmatpush1.msra.mxu0 %v184
  %217 = vmatprep.subr.mxu0 0.0
  %218 = vmatpush2.msra.mxu0 0.0
  %219 = vmatprep.subr.mxu0 0.0
  %220 = vmatpush2.msra.mxu0 0.0
  %221 = vmatprep.subr.mxu0 0.0
  %222 = vmatpush2.msra.mxu0 0.0
  %223 = vmatprep.subr.mxu0 0.0
  %224 = vmatpush2.msra.mxu0 0.0
  %225 = vmatprep.subr.mxu0 0.0
  %226 = vmatpush2.msra.mxu0 0.0
  %227 = vmatprep.subr.mxu0 0.0
  %228 = vmatpush2.msra.mxu0 0.0
  %229 = vmatprep.subr.mxu0 0.0
  %230 = vmatpush2.msra.mxu0 0.0
  %231 = vmatprep.subr.mxu0 0.0
  %232 = vmatpush2.msra.mxu0 0.0
  %233 = vmatprep.subr.mxu0 0.0
  %234 = vmatpush2.msra.mxu0 0.0
  %235 = vmatprep.subr.mxu0 0.0
  %236 = vmatpush2.msra.mxu0 0.0
  %237 = vmatprep.subr.mxu0 0.0
  %238 = vmatpush2.msra.mxu0 0.0
  %239 = vmatprep.subr.mxu0 0.0
  %240 = vmatpush2.msra.mxu0 0.0
  %241 = vmatprep.subr.mxu0 0.0
  %242 = vmatpush2.msra.mxu0 0.0
  %243 = vmatprep.subr.mxu0 0.0
  %244 = vmatpush2.msra.mxu0 0.0
  %245 = vmatprep.subr.mxu0 0.0
  %246 = vmatpush2.msra.mxu0 0.0
  %247 = vmatprep.subr.mxu0 0.0
  %248 = vmatpush2.msra.mxu0 0.0
  %249 = vmatprep.mubr.f32.mxu0 0.0
  %250 = vmatmul.mubr.f32.gmra.mxu0 %v28
  %v251 = vpop.f32.mrf.mxu0
  %v252 = vadd.f32 0.0, %v251
  %v253 = vpop.f32.mrf.mxu0
  %254 = vmatprep.mubr.f32.mxu0 0.0
  %255 = vmatmul.mubr.f32.gmra.mxu0 %v31
  %v256 = vpop.f32.mrf.mxu0
  %v257 = vadd.f32 0.0, %v256
  %v258 = vpop.f32.mrf.mxu0
  %259 = vdwg.mxu0
  %v260 = vld [vmem:[%s4] sm:$0xff]
  %v261 = vld [vmem:[%s4 + $0x8] sm:$0xff]
  %vm262 = vcmp.gt.f32.partialorder %v260, 0.0
  %vm263 = vcmp.gt.f32.partialorder %v261, 0.0
  %264 = vxpose.xlu0.b32.start [1/16] %v176, 128
  %265 = vxpose.xlu0.b32.cont [2/16] %v181, 128
  %266 = vxpose.xlu0.b32.cont [3/16] 0.0, 128
  %267 = vxpose.xlu0.b32.cont [4/16] 0.0, 128
  %268 = vxpose.xlu0.b32.cont [5/16] 0.0, 128
  %269 = vxpose.xlu0.b32.cont [6/16] 0.0, 128
  %270 = vxpose.xlu0.b32.cont [7/16] 0.0, 128
  %271 = vxpose.xlu0.b32.cont [8/16] 0.0, 128
  %272 = vxpose.xlu0.b32.cont [9/16] 0.0, 128
  %273 = vxpose.xlu0.b32.cont [10/16] 0.0, 128
  %274 = vxpose.xlu0.b32.cont [11/16] 0.0, 128
  %275 = vxpose.xlu0.b32.cont [12/16] 0.0, 128
  %276 = vxpose.xlu0.b32.cont [13/16] 0.0, 128
  %277 = vxpose.xlu0.b32.cont [14/16] 0.0, 128
  %278 = vxpose.xlu0.b32.cont [15/16] 0.0, 128
  %279 = vxpose.xlu0.b32.end [16/16] 0.0, 128
  %v280 = vpop.trf.xlu0
  %v281 = vpop.trf.xlu0
  %v282 = vpop.trf.xlu0
  %v283 = vpop.trf.xlu0
  %v284 = vpop.trf.xlu0
  %v285 = vpop.trf.xlu0
  %v286 = vpop.trf.xlu0
  %v287 = vpop.trf.xlu0
  %v288 = vpop.trf.xlu0
  %v289 = vpop.trf.xlu0
  %v290 = vpop.trf.xlu0
  %v291 = vpop.trf.xlu0
  %v292 = vpop.trf.xlu0
  %v293 = vpop.trf.xlu0
  %v294 = vpop.trf.xlu0
  %v295 = vpop.trf.xlu0
  %297 = vset.pattern.permute.xlu0 0
  %298 = vperm.xlu0 %297, %v252
  %v299 = vpop.permute.xlu0 %298
  %302 = vset.pattern.permute.xlu0 0
  %303 = vperm.xlu0 %302, %v257
  %v304 = vpop.permute.xlu0 %303
  %v306 = vlaneseq
  %v307 = vshrl.u32 %v306, 7
  %v308 = vsub.s32 0, %v307
  %v309 = vrot.slane %v280, %v308
  %v310 = vadd.f32 %v299, %v309
  %v311 = vadd.f32 %v304, %v309
  %vm312 = vcmp.gt.f32.partialorder %v310, 0.0
  %vm313 = vcmp.gt.f32.partialorder %v311, 0.0
  %v314 = vmul.f32 %v310, 0.2
  %v315 = vmul.f32 %v311, 0.2
  %v316 = vsel %vm312, %v310, %v314
  %v317 = vsel %vm313, %v311, %v315
  %v318 = vsel %vm262, %v316, -1e+30
  %v319 = vsel %vm263, %v317, -1e+30
  %vm320 = vcmask 130048
  %v321 = vsel %vm320, %v318, -inf
  %322 = vmax.xlane.f32.xlu0 %v321
  %v323 = vpop.xlane.xlu0 %322
  %v324 = vsel %vm320, %v319, -inf
  %325 = vmax.xlane.f32.xlu0 %v324
  %v326 = vpop.xlane.xlu0 %325
  %v327 = vsub.f32 %v318, %v323
  %v328 = vsub.f32 %v319, %v326
  %v329 = vmul.f32 %v327, 1.442695
  %v330 = vpow.pop %v329
  %v331 = vmul.f32 %v328, 1.442695
  %v332 = vpow.pop %v331
  %v333 = vsel %vm262, %v330, 0.0
  %v334 = vsel %vm263, %v332, 0.0
  %v335 = vsel %vm320, %v333, 0.0
  %336 = vadd.xlane.f32.xlu0 %v335
  %v337 = vpop.xlane.xlu0 %336
  %v338 = vsel %vm320, %v334, 0.0
  %339 = vadd.xlane.f32.xlu0 %v338
  %v340 = vpop.xlane.xlu0 %339
  %vm341 = vcmp.eq.f32.partialorder %v337, 0.0
  %vm342 = vcmp.eq.f32.partialorder %v340, 0.0
  %v343 = vsel %vm341, 1.0, %v337
  %v344 = vsel %vm342, 1.0, %v340
  %v345 = vrcp.pop %v343
  %v346 = vrcp.pop %v344
  %v347 = vmul.f32 %v333, %v345
  %v348 = vmul.f32 %v334, %v346
  %v350 = vsel %vm320, %v347, 0
  %v353 = vsel %vm320, %v348, 0
  %355 = vmatprep.subr.mxu0 0.0
  %356 = vmatpush1.msra.mxu0 0.0
  %357 = vmatprep.subr.mxu0 0.0
  %358 = vmatpush1.msra.mxu0 0.0
  %359 = vmatprep.subr.mxu0 0.0
  %360 = vmatpush1.msra.mxu0 0.0
  %361 = vmatprep.subr.mxu0 0.0
  %362 = vmatpush1.msra.mxu0 0.0
  %363 = vmatprep.subr.mxu0 0.0
  %364 = vmatpush1.msra.mxu0 0.0
  %365 = vmatprep.subr.mxu0 0.0
  %366 = vmatpush1.msra.mxu0 0.0
  %367 = vmatprep.subr.mxu0 0.0
  %368 = vmatpush1.msra.mxu0 0.0
  %369 = vmatprep.subr.mxu0 0.0
  %370 = vmatpush1.msra.mxu0 0.0
  %371 = vmatprep.subr.mxu0 0.0
  %372 = vmatpush1.msra.mxu0 0.0
  %373 = vmatprep.subr.mxu0 0.0
  %374 = vmatpush1.msra.mxu0 0.0
  %375 = vmatprep.subr.mxu0 0.0
  %376 = vmatpush1.msra.mxu0 0.0
  %377 = vmatprep.subr.mxu0 0.0
  %378 = vmatpush1.msra.mxu0 0.0
  %379 = vmatprep.subr.mxu0 0.0
  %380 = vmatpush1.msra.mxu0 0.0
  %381 = vmatprep.subr.mxu0 0.0
  %382 = vmatpush1.msra.mxu0 0.0
  %383 = vmatprep.subr.mxu0 0.0
  %384 = vmatpush1.msra.mxu0 %v105
  %385 = vmatprep.subr.mxu0 0.0
  %386 = vmatpush1.msra.mxu0 %v100
  %387 = vmatprep.subr.mxu0 0.0
  %388 = vmatpush2.msra.mxu0 0.0
  %389 = vmatprep.subr.mxu0 0.0
  %390 = vmatpush2.msra.mxu0 0.0
  %391 = vmatprep.subr.mxu0 0.0
  %392 = vmatpush2.msra.mxu0 0.0
  %393 = vmatprep.subr.mxu0 0.0
  %394 = vmatpush2.msra.mxu0 0.0
  %395 = vmatprep.subr.mxu0 0.0
  %396 = vmatpush2.msra.mxu0 0.0
  %397 = vmatprep.subr.mxu0 0.0
  %398 = vmatpush2.msra.mxu0 0.0
  %399 = vmatprep.subr.mxu0 0.0
  %400 = vmatpush2.msra.mxu0 0.0
  %401 = vmatprep.subr.mxu0 0.0
  %402 = vmatpush2.msra.mxu0 0.0
  %403 = vmatprep.subr.mxu0 0.0
  %404 = vmatpush2.msra.mxu0 0.0
  %405 = vmatprep.subr.mxu0 0.0
  %406 = vmatpush2.msra.mxu0 0.0
  %407 = vmatprep.subr.mxu0 0.0
  %408 = vmatpush2.msra.mxu0 0.0
  %409 = vmatprep.subr.mxu0 0.0
  %410 = vmatpush2.msra.mxu0 0.0
  %411 = vmatprep.subr.mxu0 0.0
  %412 = vmatpush2.msra.mxu0 0.0
  %413 = vmatprep.subr.mxu0 0.0
  %414 = vmatpush2.msra.mxu0 0.0
  %415 = vmatprep.subr.mxu0 0.0
  %416 = vmatpush2.msra.mxu0 0.0
  %417 = vmatprep.subr.mxu0 0.0
  %418 = vmatpush2.msra.mxu0 0.0
  %419 = vmatprep.mubr.f32.mxu0 0.0
  %420 = vmatmul.mubr.f32.gmra.mxu0 %v350
  %v421 = vpop.f32.mrf.mxu0
  %v422 = vadd.f32 0.0, %v421
  %v423 = vpop.f32.mrf.mxu0
  %424 = vmatprep.mubr.f32.mxu0 0.0
  %425 = vmatmul.mubr.f32.gmra.mxu0 %v353
  %v426 = vpop.f32.mrf.mxu0
  %v427 = vadd.f32 0.0, %v426
  %v428 = vpop.f32.mrf.mxu0
  %429 = vdwg.mxu0
  %432 = vrot.lane.b32.xlu0 %v176, 127
  %v433 = vpop.permute.xlu0 %432
  %434 = vrot.lane.b32.xlu0 %v181, 127
  %v435 = vpop.permute.xlu0 %434
  %438 = vxpose.xlu0.b32.start [1/16] %v433, 128
  %439 = vxpose.xlu0.b32.cont [2/16] %v435, 128
  %440 = vxpose.xlu0.b32.cont [3/16] 0.0, 128
  %441 = vxpose.xlu0.b32.cont [4/16] 0.0, 128
  %442 = vxpose.xlu0.b32.cont [5/16] 0.0, 128
  %443 = vxpose.xlu0.b32.cont [6/16] 0.0, 128
  %444 = vxpose.xlu0.b32.cont [7/16] 0.0, 128
  %445 = vxpose.xlu0.b32.cont [8/16] 0.0, 128
  %446 = vxpose.xlu0.b32.cont [9/16] 0.0, 128
  %447 = vxpose.xlu0.b32.cont [10/16] 0.0, 128
  %448 = vxpose.xlu0.b32.cont [11/16] 0.0, 128
  %449 = vxpose.xlu0.b32.cont [12/16] 0.0, 128
  %450 = vxpose.xlu0.b32.cont [13/16] 0.0, 128
  %451 = vxpose.xlu0.b32.cont [14/16] 0.0, 128
  %452 = vxpose.xlu0.b32.cont [15/16] 0.0, 128
  %453 = vxpose.xlu0.b32.end [16/16] 0.0, 128
  %v454 = vpop.trf.xlu0
  %v455 = vpop.trf.xlu0
  %v456 = vpop.trf.xlu0
  %v457 = vpop.trf.xlu0
  %v458 = vpop.trf.xlu0
  %v459 = vpop.trf.xlu0
  %v460 = vpop.trf.xlu0
  %v461 = vpop.trf.xlu0
  %v462 = vpop.trf.xlu0
  %v463 = vpop.trf.xlu0
  %v464 = vpop.trf.xlu0
  %v465 = vpop.trf.xlu0
  %v466 = vpop.trf.xlu0
  %v467 = vpop.trf.xlu0
  %v468 = vpop.trf.xlu0
  %v469 = vpop.trf.xlu0
  %470 = vset.pattern.permute.xlu0 1
  %471 = vperm.xlu0 %470, %v252
  %v472 = vpop.permute.xlu0 %471
  %474 = vset.pattern.permute.xlu0 1
  %475 = vperm.xlu0 %474, %v257
  %v476 = vpop.permute.xlu0 %475
  %v478 = vlaneseq
  %v479 = vshrl.u32 %v478, 7
  %v480 = vsub.s32 0, %v479
  %v481 = vrot.slane %v454, %v480
  %v482 = vadd.f32 %v472, %v481
  %v483 = vadd.f32 %v476, %v481
  %vm484 = vcmp.gt.f32.partialorder %v482, 0.0
  %vm485 = vcmp.gt.f32.partialorder %v483, 0.0
  %v486 = vmul.f32 %v482, 0.2
  %v487 = vmul.f32 %v483, 0.2
  %v488 = vsel %vm484, %v482, %v486
  %v489 = vsel %vm485, %v483, %v487
  %v490 = vsel %vm262, %v488, -1e+30
  %v491 = vsel %vm263, %v489, -1e+30
  %v492 = vsel %vm320, %v490, -inf
  %493 = vmax.xlane.f32.xlu0 %v492
  %v494 = vpop.xlane.xlu0 %493
  %v495 = vsel %vm320, %v491, -inf
  %496 = vmax.xlane.f32.xlu0 %v495
  %v497 = vpop.xlane.xlu0 %496
  %v498 = vsub.f32 %v490, %v494
  %v499 = vsub.f32 %v491, %v497
  %v500 = vmul.f32 %v498, 1.442695
  %v501 = vpow.pop %v500
  %v502 = vmul.f32 %v499, 1.442695
  %v503 = vpow.pop %v502
  %v504 = vsel %vm262, %v501, 0.0
  %v505 = vsel %vm263, %v503, 0.0
  %v506 = vsel %vm320, %v504, 0.0
  %507 = vadd.xlane.f32.xlu0 %v506
  %v508 = vpop.xlane.xlu0 %507
  %v509 = vsel %vm320, %v505, 0.0
  %510 = vadd.xlane.f32.xlu0 %v509
  %v511 = vpop.xlane.xlu0 %510
  %vm512 = vcmp.eq.f32.partialorder %v508, 0.0
  %vm513 = vcmp.eq.f32.partialorder %v511, 0.0
  %v514 = vsel %vm512, 1.0, %v508
  %v515 = vsel %vm513, 1.0, %v511
  %v516 = vrcp.pop %v514
  %v517 = vrcp.pop %v515
  %v518 = vmul.f32 %v504, %v516
  %v519 = vmul.f32 %v505, %v517
  %522 = vrot.lane.b32.xlu0 %v100, 120
  %v523 = vpop.permute.xlu0 %522
  %524 = vrot.lane.b32.xlu0 %v105, 120
  %v525 = vpop.permute.xlu0 %524
  %v529 = vsel %vm320, %v518, 0
  %v532 = vsel %vm320, %v519, 0
  %534 = vmatprep.subr.mxu0 0.0
  %535 = vmatpush1.msra.mxu0 0.0
  %536 = vmatprep.subr.mxu0 0.0
  %537 = vmatpush1.msra.mxu0 0.0
  %538 = vmatprep.subr.mxu0 0.0
  %539 = vmatpush1.msra.mxu0 0.0
  %540 = vmatprep.subr.mxu0 0.0
  %541 = vmatpush1.msra.mxu0 0.0
  %542 = vmatprep.subr.mxu0 0.0
  %543 = vmatpush1.msra.mxu0 0.0
  %544 = vmatprep.subr.mxu0 0.0
  %545 = vmatpush1.msra.mxu0 0.0
  %546 = vmatprep.subr.mxu0 0.0
  %547 = vmatpush1.msra.mxu0 0.0
  %548 = vmatprep.subr.mxu0 0.0
  %549 = vmatpush1.msra.mxu0 0.0
  %550 = vmatprep.subr.mxu0 0.0
  %551 = vmatpush1.msra.mxu0 0.0
  %552 = vmatprep.subr.mxu0 0.0
  %553 = vmatpush1.msra.mxu0 0.0
  %554 = vmatprep.subr.mxu0 0.0
  %555 = vmatpush1.msra.mxu0 0.0
  %556 = vmatprep.subr.mxu0 0.0
  %557 = vmatpush1.msra.mxu0 0.0
  %558 = vmatprep.subr.mxu0 0.0
  %559 = vmatpush1.msra.mxu0 0.0
  %560 = vmatprep.subr.mxu0 0.0
  %561 = vmatpush1.msra.mxu0 0.0
  %562 = vmatprep.subr.mxu0 0.0
  %563 = vmatpush1.msra.mxu0 %v525
  %564 = vmatprep.subr.mxu0 0.0
  %565 = vmatpush1.msra.mxu0 %v523
  %566 = vmatprep.subr.mxu0 0.0
  %567 = vmatpush2.msra.mxu0 0.0
  %568 = vmatprep.subr.mxu0 0.0
  %569 = vmatpush2.msra.mxu0 0.0
  %570 = vmatprep.subr.mxu0 0.0
  %571 = vmatpush2.msra.mxu0 0.0
  %572 = vmatprep.subr.mxu0 0.0
  %573 = vmatpush2.msra.mxu0 0.0
  %574 = vmatprep.subr.mxu0 0.0
  %575 = vmatpush2.msra.mxu0 0.0
  %576 = vmatprep.subr.mxu0 0.0
  %577 = vmatpush2.msra.mxu0 0.0
  %578 = vmatprep.subr.mxu0 0.0
  %579 = vmatpush2.msra.mxu0 0.0
  %580 = vmatprep.subr.mxu0 0.0
  %581 = vmatpush2.msra.mxu0 0.0
  %582 = vmatprep.subr.mxu0 0.0
  %583 = vmatpush2.msra.mxu0 0.0
  %584 = vmatprep.subr.mxu0 0.0
  %585 = vmatpush2.msra.mxu0 0.0
  %586 = vmatprep.subr.mxu0 0.0
  %587 = vmatpush2.msra.mxu0 0.0
  %588 = vmatprep.subr.mxu0 0.0
  %589 = vmatpush2.msra.mxu0 0.0
  %590 = vmatprep.subr.mxu0 0.0
  %591 = vmatpush2.msra.mxu0 0.0
  %592 = vmatprep.subr.mxu0 0.0
  %593 = vmatpush2.msra.mxu0 0.0
  %594 = vmatprep.subr.mxu0 0.0
  %595 = vmatpush2.msra.mxu0 0.0
  %596 = vmatprep.subr.mxu0 0.0
  %597 = vmatpush2.msra.mxu0 0.0
  %598 = vmatprep.mubr.f32.mxu0 0.0
  %599 = vmatmul.mubr.f32.gmra.mxu0 %v529
  %v600 = vpop.f32.mrf.mxu0
  %v601 = vadd.f32 0.0, %v600
  %v602 = vpop.f32.mrf.mxu0
  %603 = vmatprep.mubr.f32.mxu0 0.0
  %604 = vmatmul.mubr.f32.gmra.mxu0 %v532
  %v605 = vpop.f32.mrf.mxu0
  %v606 = vadd.f32 0.0, %v605
  %v607 = vpop.f32.mrf.mxu0
  %608 = vdwg.mxu0
  %609 = vrot.lane.b32.xlu0 %v176, 126
  %v610 = vpop.permute.xlu0 %609
  %611 = vrot.lane.b32.xlu0 %v181, 126
  %v612 = vpop.permute.xlu0 %611
  %615 = vxpose.xlu0.b32.start [1/16] %v610, 128
  %616 = vxpose.xlu0.b32.cont [2/16] %v612, 128
  %617 = vxpose.xlu0.b32.cont [3/16] 0.0, 128
  %618 = vxpose.xlu0.b32.cont [4/16] 0.0, 128
  %619 = vxpose.xlu0.b32.cont [5/16] 0.0, 128
  %620 = vxpose.xlu0.b32.cont [6/16] 0.0, 128
  %621 = vxpose.xlu0.b32.cont [7/16] 0.0, 128
  %622 = vxpose.xlu0.b32.cont [8/16] 0.0, 128
  %623 = vxpose.xlu0.b32.cont [9/16] 0.0, 128
  %624 = vxpose.xlu0.b32.cont [10/16] 0.0, 128
  %625 = vxpose.xlu0.b32.cont [11/16] 0.0, 128
  %626 = vxpose.xlu0.b32.cont [12/16] 0.0, 128
  %627 = vxpose.xlu0.b32.cont [13/16] 0.0, 128
  %628 = vxpose.xlu0.b32.cont [14/16] 0.0, 128
  %629 = vxpose.xlu0.b32.cont [15/16] 0.0, 128
  %630 = vxpose.xlu0.b32.end [16/16] 0.0, 128
  %v631 = vpop.trf.xlu0
  %v632 = vpop.trf.xlu0
  %v633 = vpop.trf.xlu0
  %v634 = vpop.trf.xlu0
  %v635 = vpop.trf.xlu0
  %v636 = vpop.trf.xlu0
  %v637 = vpop.trf.xlu0
  %v638 = vpop.trf.xlu0
  %v639 = vpop.trf.xlu0
  %v640 = vpop.trf.xlu0
  %v641 = vpop.trf.xlu0
  %v642 = vpop.trf.xlu0
  %v643 = vpop.trf.xlu0
  %v644 = vpop.trf.xlu0
  %v645 = vpop.trf.xlu0
  %v646 = vpop.trf.xlu0
  %647 = vset.pattern.permute.xlu0 2
  %648 = vperm.xlu0 %647, %v252
  %v649 = vpop.permute.xlu0 %648
  %651 = vset.pattern.permute.xlu0 2
  %652 = vperm.xlu0 %651, %v257
  %v653 = vpop.permute.xlu0 %652
  %v655 = vlaneseq
  %v656 = vshrl.u32 %v655, 7
  %v657 = vsub.s32 0, %v656
  %v658 = vrot.slane %v631, %v657
  %v659 = vadd.f32 %v649, %v658
  %v660 = vadd.f32 %v653, %v658
  %vm661 = vcmp.gt.f32.partialorder %v659, 0.0
  %vm662 = vcmp.gt.f32.partialorder %v660, 0.0
  %v663 = vmul.f32 %v659, 0.2
  %v664 = vmul.f32 %v660, 0.2
  %v665 = vsel %vm661, %v659, %v663
  %v666 = vsel %vm662, %v660, %v664
  %v667 = vsel %vm262, %v665, -1e+30
  %v668 = vsel %vm263, %v666, -1e+30
  %v669 = vsel %vm320, %v667, -inf
  %670 = vmax.xlane.f32.xlu0 %v669
  %v671 = vpop.xlane.xlu0 %670
  %v672 = vsel %vm320, %v668, -inf
  %673 = vmax.xlane.f32.xlu0 %v672
  %v674 = vpop.xlane.xlu0 %673
  %v675 = vsub.f32 %v667, %v671
  %v676 = vsub.f32 %v668, %v674
  %v677 = vmul.f32 %v675, 1.442695
  %v678 = vpow.pop %v677
  %v679 = vmul.f32 %v676, 1.442695
  %v680 = vpow.pop %v679
  %v681 = vsel %vm262, %v678, 0.0
  %v682 = vsel %vm263, %v680, 0.0
  %v683 = vsel %vm320, %v681, 0.0
  %684 = vadd.xlane.f32.xlu0 %v683
  %v685 = vpop.xlane.xlu0 %684
  %v686 = vsel %vm320, %v682, 0.0
  %687 = vadd.xlane.f32.xlu0 %v686
  %v688 = vpop.xlane.xlu0 %687
  %vm689 = vcmp.eq.f32.partialorder %v685, 0.0
  %vm690 = vcmp.eq.f32.partialorder %v688, 0.0
  %v691 = vsel %vm689, 1.0, %v685
  %v692 = vsel %vm690, 1.0, %v688
  %v693 = vrcp.pop %v691
  %v694 = vrcp.pop %v692
  %v695 = vmul.f32 %v681, %v693
  %v696 = vmul.f32 %v682, %v694
  %697 = vrot.lane.b32.xlu0 %v100, 112
  %v698 = vpop.permute.xlu0 %697
  %699 = vrot.lane.b32.xlu0 %v105, 112
  %v700 = vpop.permute.xlu0 %699
  %v704 = vsel %vm320, %v695, 0
  %v707 = vsel %vm320, %v696, 0
  %709 = vmatprep.subr.mxu0 0.0
  %710 = vmatpush1.msra.mxu0 0.0
  %711 = vmatprep.subr.mxu0 0.0
  %712 = vmatpush1.msra.mxu0 0.0
  %713 = vmatprep.subr.mxu0 0.0
  %714 = vmatpush1.msra.mxu0 0.0
  %715 = vmatprep.subr.mxu0 0.0
  %716 = vmatpush1.msra.mxu0 0.0
  %717 = vmatprep.subr.mxu0 0.0
  %718 = vmatpush1.msra.mxu0 0.0
  %719 = vmatprep.subr.mxu0 0.0
  %720 = vmatpush1.msra.mxu0 0.0
  %721 = vmatprep.subr.mxu0 0.0
  %722 = vmatpush1.msra.mxu0 0.0
  %723 = vmatprep.subr.mxu0 0.0
  %724 = vmatpush1.msra.mxu0 0.0
  %725 = vmatprep.subr.mxu0 0.0
  %726 = vmatpush1.msra.mxu0 0.0
  %727 = vmatprep.subr.mxu0 0.0
  %728 = vmatpush1.msra.mxu0 0.0
  %729 = vmatprep.subr.mxu0 0.0
  %730 = vmatpush1.msra.mxu0 0.0
  %731 = vmatprep.subr.mxu0 0.0
  %732 = vmatpush1.msra.mxu0 0.0
  %733 = vmatprep.subr.mxu0 0.0
  %734 = vmatpush1.msra.mxu0 0.0
  %735 = vmatprep.subr.mxu0 0.0
  %736 = vmatpush1.msra.mxu0 0.0
  %737 = vmatprep.subr.mxu0 0.0
  %738 = vmatpush1.msra.mxu0 %v700
  %739 = vmatprep.subr.mxu0 0.0
  %740 = vmatpush1.msra.mxu0 %v698
  %741 = vmatprep.subr.mxu0 0.0
  %742 = vmatpush2.msra.mxu0 0.0
  %743 = vmatprep.subr.mxu0 0.0
  %744 = vmatpush2.msra.mxu0 0.0
  %745 = vmatprep.subr.mxu0 0.0
  %746 = vmatpush2.msra.mxu0 0.0
  %747 = vmatprep.subr.mxu0 0.0
  %748 = vmatpush2.msra.mxu0 0.0
  %749 = vmatprep.subr.mxu0 0.0
  %750 = vmatpush2.msra.mxu0 0.0
  %751 = vmatprep.subr.mxu0 0.0
  %752 = vmatpush2.msra.mxu0 0.0
  %753 = vmatprep.subr.mxu0 0.0
  %754 = vmatpush2.msra.mxu0 0.0
  %755 = vmatprep.subr.mxu0 0.0
  %756 = vmatpush2.msra.mxu0 0.0
  %757 = vmatprep.subr.mxu0 0.0
  %758 = vmatpush2.msra.mxu0 0.0
  %759 = vmatprep.subr.mxu0 0.0
  %760 = vmatpush2.msra.mxu0 0.0
  %761 = vmatprep.subr.mxu0 0.0
  %762 = vmatpush2.msra.mxu0 0.0
  %763 = vmatprep.subr.mxu0 0.0
  %764 = vmatpush2.msra.mxu0 0.0
  %765 = vmatprep.subr.mxu0 0.0
  %766 = vmatpush2.msra.mxu0 0.0
  %767 = vmatprep.subr.mxu0 0.0
  %768 = vmatpush2.msra.mxu0 0.0
  %769 = vmatprep.subr.mxu0 0.0
  %770 = vmatpush2.msra.mxu0 0.0
  %771 = vmatprep.subr.mxu0 0.0
  %772 = vmatpush2.msra.mxu0 0.0
  %773 = vmatprep.mubr.f32.mxu0 0.0
  %774 = vmatmul.mubr.f32.gmra.mxu0 %v704
  %v775 = vpop.f32.mrf.mxu0
  %v776 = vadd.f32 0.0, %v775
  %v777 = vpop.f32.mrf.mxu0
  %778 = vmatprep.mubr.f32.mxu0 0.0
  %779 = vmatmul.mubr.f32.gmra.mxu0 %v707
  %v780 = vpop.f32.mrf.mxu0
  %v781 = vadd.f32 0.0, %v780
  %v782 = vpop.f32.mrf.mxu0
  %783 = vdwg.mxu0
  %784 = vrot.lane.b32.xlu0 %v176, 125
  %v785 = vpop.permute.xlu0 %784
  %786 = vrot.lane.b32.xlu0 %v181, 125
  %v787 = vpop.permute.xlu0 %786
  %790 = vxpose.xlu0.b32.start [1/16] %v785, 128
  %791 = vxpose.xlu0.b32.cont [2/16] %v787, 128
  %792 = vxpose.xlu0.b32.cont [3/16] 0.0, 128
  %793 = vxpose.xlu0.b32.cont [4/16] 0.0, 128
  %794 = vxpose.xlu0.b32.cont [5/16] 0.0, 128
  %795 = vxpose.xlu0.b32.cont [6/16] 0.0, 128
  %796 = vxpose.xlu0.b32.cont [7/16] 0.0, 128
  %797 = vxpose.xlu0.b32.cont [8/16] 0.0, 128
  %798 = vxpose.xlu0.b32.cont [9/16] 0.0, 128
  %799 = vxpose.xlu0.b32.cont [10/16] 0.0, 128
  %800 = vxpose.xlu0.b32.cont [11/16] 0.0, 128
  %801 = vxpose.xlu0.b32.cont [12/16] 0.0, 128
  %802 = vxpose.xlu0.b32.cont [13/16] 0.0, 128
  %803 = vxpose.xlu0.b32.cont [14/16] 0.0, 128
  %804 = vxpose.xlu0.b32.cont [15/16] 0.0, 128
  %805 = vxpose.xlu0.b32.end [16/16] 0.0, 128
  %v806 = vpop.trf.xlu0
  %v807 = vpop.trf.xlu0
  %v808 = vpop.trf.xlu0
  %v809 = vpop.trf.xlu0
  %v810 = vpop.trf.xlu0
  %v811 = vpop.trf.xlu0
  %v812 = vpop.trf.xlu0
  %v813 = vpop.trf.xlu0
  %v814 = vpop.trf.xlu0
  %v815 = vpop.trf.xlu0
  %v816 = vpop.trf.xlu0
  %v817 = vpop.trf.xlu0
  %v818 = vpop.trf.xlu0
  %v819 = vpop.trf.xlu0
  %v820 = vpop.trf.xlu0
  %v821 = vpop.trf.xlu0
  %822 = vset.pattern.permute.xlu0 3
  %823 = vperm.xlu0 %822, %v252
  %v824 = vpop.permute.xlu0 %823
  %826 = vset.pattern.permute.xlu0 3
  %827 = vperm.xlu0 %826, %v257
  %v828 = vpop.permute.xlu0 %827
  %v830 = vlaneseq
  %v831 = vshrl.u32 %v830, 7
  %v832 = vsub.s32 0, %v831
  %v833 = vrot.slane %v806, %v832
  %v834 = vadd.f32 %v824, %v833
  %v835 = vadd.f32 %v828, %v833
  %vm836 = vcmp.gt.f32.partialorder %v834, 0.0
  %vm837 = vcmp.gt.f32.partialorder %v835, 0.0
  %v838 = vmul.f32 %v834, 0.2
  %v839 = vmul.f32 %v835, 0.2
  %v840 = vsel %vm836, %v834, %v838
  %v841 = vsel %vm837, %v835, %v839
  %v842 = vsel %vm262, %v840, -1e+30
  %v843 = vsel %vm263, %v841, -1e+30
  %v844 = vsel %vm320, %v842, -inf
  %845 = vmax.xlane.f32.xlu0 %v844
  %v846 = vpop.xlane.xlu0 %845
  %v847 = vsel %vm320, %v843, -inf
  %848 = vmax.xlane.f32.xlu0 %v847
  %v849 = vpop.xlane.xlu0 %848
  %v850 = vsub.f32 %v842, %v846
  %v851 = vsub.f32 %v843, %v849
  %v852 = vmul.f32 %v850, 1.442695
  %v853 = vpow.pop %v852
  %v854 = vmul.f32 %v851, 1.442695
  %v855 = vpow.pop %v854
  %v856 = vsel %vm262, %v853, 0.0
  %v857 = vsel %vm263, %v855, 0.0
  %v858 = vsel %vm320, %v856, 0.0
  %859 = vadd.xlane.f32.xlu0 %v858
  %v860 = vpop.xlane.xlu0 %859
  %v861 = vsel %vm320, %v857, 0.0
  %862 = vadd.xlane.f32.xlu0 %v861
  %v863 = vpop.xlane.xlu0 %862
  %vm864 = vcmp.eq.f32.partialorder %v860, 0.0
  %vm865 = vcmp.eq.f32.partialorder %v863, 0.0
  %v866 = vsel %vm864, 1.0, %v860
  %v867 = vsel %vm865, 1.0, %v863
  %v868 = vrcp.pop %v866
  %v869 = vrcp.pop %v867
  %v870 = vmul.f32 %v856, %v868
  %v871 = vmul.f32 %v857, %v869
  %872 = vrot.lane.b32.xlu0 %v100, 104
  %v873 = vpop.permute.xlu0 %872
  %874 = vrot.lane.b32.xlu0 %v105, 104
  %v875 = vpop.permute.xlu0 %874
  %v879 = vsel %vm320, %v870, 0
  %v882 = vsel %vm320, %v871, 0
  %884 = vmatprep.subr.mxu0 0.0
  %885 = vmatpush1.msra.mxu0 0.0
  %886 = vmatprep.subr.mxu0 0.0
  %887 = vmatpush1.msra.mxu0 0.0
  %888 = vmatprep.subr.mxu0 0.0
  %889 = vmatpush1.msra.mxu0 0.0
  %890 = vmatprep.subr.mxu0 0.0
  %891 = vmatpush1.msra.mxu0 0.0
  %892 = vmatprep.subr.mxu0 0.0
  %893 = vmatpush1.msra.mxu0 0.0
  %894 = vmatprep.subr.mxu0 0.0
  %895 = vmatpush1.msra.mxu0 0.0
  %896 = vmatprep.subr.mxu0 0.0
  %897 = vmatpush1.msra.mxu0 0.0
  %898 = vmatprep.subr.mxu0 0.0
  %899 = vmatpush1.msra.mxu0 0.0
  %900 = vmatprep.subr.mxu0 0.0
  %901 = vmatpush1.msra.mxu0 0.0
  %902 = vmatprep.subr.mxu0 0.0
  %903 = vmatpush1.msra.mxu0 0.0
  %904 = vmatprep.subr.mxu0 0.0
  %905 = vmatpush1.msra.mxu0 0.0
  %906 = vmatprep.subr.mxu0 0.0
  %907 = vmatpush1.msra.mxu0 0.0
  %908 = vmatprep.subr.mxu0 0.0
  %909 = vmatpush1.msra.mxu0 0.0
  %910 = vmatprep.subr.mxu0 0.0
  %911 = vmatpush1.msra.mxu0 0.0
  %912 = vmatprep.subr.mxu0 0.0
  %913 = vmatpush1.msra.mxu0 %v875
  %914 = vmatprep.subr.mxu0 0.0
  %915 = vmatpush1.msra.mxu0 %v873
  %916 = vmatprep.subr.mxu0 0.0
  %917 = vmatpush2.msra.mxu0 0.0
  %918 = vmatprep.subr.mxu0 0.0
  %919 = vmatpush2.msra.mxu0 0.0
  %920 = vmatprep.subr.mxu0 0.0
  %921 = vmatpush2.msra.mxu0 0.0
  %922 = vmatprep.subr.mxu0 0.0
  %923 = vmatpush2.msra.mxu0 0.0
  %924 = vmatprep.subr.mxu0 0.0
  %925 = vmatpush2.msra.mxu0 0.0
  %926 = vmatprep.subr.mxu0 0.0
  %927 = vmatpush2.msra.mxu0 0.0
  %928 = vmatprep.subr.mxu0 0.0
  %929 = vmatpush2.msra.mxu0 0.0
  %930 = vmatprep.subr.mxu0 0.0
  %931 = vmatpush2.msra.mxu0 0.0
  %932 = vmatprep.subr.mxu0 0.0
  %933 = vmatpush2.msra.mxu0 0.0
  %934 = vmatprep.subr.mxu0 0.0
  %935 = vmatpush2.msra.mxu0 0.0
  %936 = vmatprep.subr.mxu0 0.0
  %937 = vmatpush2.msra.mxu0 0.0
  %938 = vmatprep.subr.mxu0 0.0
  %939 = vmatpush2.msra.mxu0 0.0
  %940 = vmatprep.subr.mxu0 0.0
  %941 = vmatpush2.msra.mxu0 0.0
  %942 = vmatprep.subr.mxu0 0.0
  %943 = vmatpush2.msra.mxu0 0.0
  %944 = vmatprep.subr.mxu0 0.0
  %945 = vmatpush2.msra.mxu0 0.0
  %946 = vmatprep.subr.mxu0 0.0
  %947 = vmatpush2.msra.mxu0 0.0
  %948 = vmatprep.mubr.f32.mxu0 0.0
  %949 = vmatmul.mubr.f32.gmra.mxu0 %v879
  %v950 = vpop.f32.mrf.mxu0
  %v951 = vadd.f32 0.0, %v950
  %v952 = vpop.f32.mrf.mxu0
  %953 = vmatprep.mubr.f32.mxu0 0.0
  %954 = vmatmul.mubr.f32.gmra.mxu0 %v882
  %v955 = vpop.f32.mrf.mxu0
  %v956 = vadd.f32 0.0, %v955
  %v957 = vpop.f32.mrf.mxu0
  %958 = vdwg.mxu0
  %961 = vrot.lane.b32.xlu0 %v601, 8
  %v962 = vpop.permute.xlu0 %961
  %963 = vrot.lane.b32.xlu0 %v606, 8
  %v964 = vpop.permute.xlu0 %963
  %969 = vrot.lane.b32.xlu0 %v776, 16
  %v970 = vpop.permute.xlu0 %969
  %971 = vrot.lane.b32.xlu0 %v781, 16
  %v972 = vpop.permute.xlu0 %971
  %977 = vrot.lane.b32.xlu0 %v951, 24
  %v978 = vpop.permute.xlu0 %977
  %979 = vrot.lane.b32.xlu0 %v956, 24
  %v980 = vpop.permute.xlu0 %979
  %v983 = vsel %vm26, %v422, %v962
  %v984 = vsel %vm26, %v427, %v964
  %v985 = vsel %vm320, %v983, %v970
  %v986 = vsel %vm320, %v984, %v972
  %vm987 = vcmask 195584
  %v988 = vsel %vm987, %v985, %v978
  %v989 = vsel %vm987, %v986, %v980
  %v990 = vld [vmem:[%s5] sm:$0x1]
  %v992 = vlaneseq
  %v993 = vshrl.u32 %v992, 7
  %v994 = vsub.s32 0, %v993
  %v995 = vrot.slane %v990, %v994
  %v997 = vadd.f32 %v988, %v995
  %v998 = vadd.f32 %v989, %v995
  %vm999 = vcmp.gt.f32.partialorder %v997, 0.0
  %vm1000 = vcmp.gt.f32.partialorder %v998, 0.0
  %v1001 = vmul.f32 %v997, 1.442695
  %v1002 = vpow.pop %v1001
  %v1003 = vmul.f32 %v998, 1.442695
  %v1004 = vpow.pop %v1003
  %v1005 = vsub.f32 %v1002, 1.0
  %v1006 = vsub.f32 %v1004, 1.0
  %v1007 = vsel %vm999, %v997, %v1005
  %v1008 = vsel %vm1000, %v998, %v1006
  %vm1009 = vcmask 261120
  %1010 = vst.msk [vmem:[%s6] sm:$0xff] %vm1009, %v1007
  %1011 = vst.msk [vmem:[%s6 + $0x8] sm:$0xff] %vm1009, %v1008
  // Predicated region
  $region26: #{gat_net_forward.2} parent=0 // pred_check
    _
  $region27: #{gat_net_forward.2} parent=0 // pred_check_branch
    %1013 = sbr.rel (0) target = $region29
  $region28: #{gat_net_forward.2} parent=0 // pred_region
    _
  $region29: #{gat_net_forward.2} parent=0 // pred_fallthru
    _
  // Predicated region
  $region30: #{gat_net_forward.2} parent=0 // pred_check
    _
  $region31: #{gat_net_forward.2} parent=0 // pred_check_branch
    %1015 = sbr.rel (0) target = $region33
  $region32: #{gat_net_forward.2} parent=0 // pred_region
    _
  $region33: #{gat_net_forward.2} parent=0 // pred_fallthru
    _

</llo_original>
